<compile_context>
chip_gen: v5e
topology: v5e:2x2
jax: 0.10.0
libtpu: 0.0.40
codegen_flags: <defaults>
</compile_context>

<pallas_src>
import functools

import jax
import jax.numpy as jnp
from jax.experimental import pallas as pl
from jax.experimental.pallas import tpu as pltpu

_LANE = 128      # TPU lane width (last vreg dim)
_SUBLANE = 8     # TPU sublane width (second-to-last vreg dim)


def _gelu_tanh(x):
    # Tanh-approximation GELU (matches the book's custom GELU module).
    return 0.5 * x * (
        1.0 + jnp.tanh(jnp.sqrt(2.0 / jnp.pi) * (x + 0.044715 * x * x * x))
    )


def _fused_mlp_kernel(x_ref, *refs, shortcut_flags):
    """Fused forward: 5 x (Linear + GELU), optional residual per layer.

    refs = (w1, b1, ..., wN, bN, o_ref). shortcut_flags is a static tuple of
    bools (one per layer) decided at trace time from the ORIGINAL shapes.
    """
    o_ref = refs[-1]
    wb_refs = refs[:-1]

    # Running activation stays in f32 (bias add / GELU / residual in f32 keeps
    # the kernel numerically safe on v5e, which has no bf16 VPU/EUP).
    x = x_ref[...].astype(jnp.float32)
    for layer, add_shortcut in enumerate(shortcut_flags):
        w = wb_refs[2 * layer][...]        # bf16, VMEM-resident
        b = wb_refs[2 * layer + 1][...]    # f32
        # MXU: bf16 x bf16 -> f32 accumulate.
        h = jnp.dot(x.astype(jnp.bfloat16), w,
                    preferred_element_type=jnp.float32) + b
        y = _gelu_tanh(h)
        if add_shortcut:   # static: PyTorch's x.shape == layer_output.shape check
            y = x + y
        x = y
    o_ref[...] = x.astype(o_ref.dtype)


def _choose_batch_tile(B, block_batch):
    """Batch tile: large enough to amortize per-step overhead / fill the MXU,
    but giving >=2 grid steps when possible (megacore sharding on v7x)."""
    if B <= _SUBLANE:
        return B                               # full dim -> no (8,128) issue
    half = -(-B // 2)                          # ceil(B/2) -> at least 2 steps
    bm = min(block_batch, ((half + _SUBLANE - 1) // _SUBLANE) * _SUBLANE)
    return max(bm, _SUBLANE)


def example_deep_neural_network(x, params, use_shortcut: bool, *, block_batch=512):
    """Forward pass matching ExampleDeepNeuralNetwork.forward (single fused kernel).

    x:      [B, layer_sizes[0]]
    params: list of (w, b) with w: [Din, Dout] (PyTorch W^T), b: [1, Dout]
    """
    B, din0 = x.shape
    orig_dout = params[-1][0].shape[1]
    out_dtype = x.dtype

    # Static per-layer shortcut decision from ORIGINAL (unpadded) shapes: the
    # batch dim is unchanged by Linear, so the shape-equality check is Din==Dout.
    shortcut_flags = tuple(
        bool(use_shortcut and w.shape[0] == w.shape[1]) for w, _ in params
    )

    # Lane-pad the final layer's output dim to a multiple of 128 so the HBM
    # store is unmasked/lane-dense. Only when no residual rides on that layer
    # (otherwise shapes would no longer match for the add).
    pad_out = (-orig_dout) % _LANE
    params = list(params)
    if pad_out and not shortcut_flags[-1]:
        w_last, b_last = params[-1]
        params[-1] = (jnp.pad(w_last, ((0, 0), (0, pad_out))),
                      jnp.pad(b_last, ((0, 0), (0, pad_out))))
        dout_store = orig_dout + pad_out
    else:
        dout_store = orig_dout

    # bf16 weights + input: halves resident VMEM + HBM traffic, native MXU path.
    x_in = x.astype(jnp.bfloat16)
    params = [(w.astype(jnp.bfloat16), b.astype(jnp.float32)) for w, b in params]

    bm = _choose_batch_tile(B, block_batch)
    grid = (pl.cdiv(B, bm),)
    # Note: when B % bm != 0 the last block reads padded rows; benign (finite
    # garbage through GELU stays finite and out-of-range output rows are clipped).

    flat_inputs = [x_in]
    for w, b in params:
        flat_inputs += [w, b]

    # VMEM budget: resident weights/biases (x buffer count) + double-buffered
    # activation/output tiles, with headroom. Never below the 32 MiB default.
    def vmem_need(weight_buffers):
        wb = sum((w.size * w.dtype.itemsize + b.size * b.dtype.itemsize)
                 * weight_buffers for w, b in params)
        x_tile = 2 * bm * din0 * x_in.dtype.itemsize
        o_tile = 2 * bm * dout_store * jnp.dtype(out_dtype).itemsize
        return wb + x_tile + o_tile

    # Advisory cost estimate for XLA's scheduler around the fused call.
    flops = 2 * B * sum(w.shape[0] * w.shape[1] for w, _ in params)
    transcendentals = B * sum(w.shape[1] for w, _ in params)   # one tanh / output
    bytes_accessed = (x_in.size * x_in.dtype.itemsize
                      + sum(w.size * w.dtype.itemsize + b.size * b.dtype.itemsize
                            for w, b in params)
                      + B * dout_store * jnp.dtype(out_dtype).itemsize)
    cost = pl.CostEstimate(flops=int(flops),
                           transcendentals=int(transcendentals),
                           bytes_accessed=int(bytes_accessed))

    kernel = functools.partial(_fused_mlp_kernel, shortcut_flags=shortcut_flags)

    def build_call(weight_pipeline_mode, weight_buffers):
        in_specs = [pl.BlockSpec((bm, din0), lambda i: (i, 0))]
        for w, b in params:
            # Constant index_map in the batch axis -> fetched once, VMEM-resident.
            if weight_pipeline_mode is None:
                in_specs.append(pl.BlockSpec(w.shape, lambda i: (0, 0)))
                in_specs.append(pl.BlockSpec(b.shape, lambda i: (0, 0)))
            else:
                in_specs.append(pl.BlockSpec(w.shape, lambda i: (0, 0),
                                             pipeline_mode=weight_pipeline_mode))
                in_specs.append(pl.BlockSpec(b.shape, lambda i: (0, 0),
                                             pipeline_mode=weight_pipeline_mode))
        vmem_limit = int(min(128 << 20, max(32 << 20, 1.5 * vmem_need(weight_buffers))))
        return pl.pallas_call(
            kernel,
            out_shape=jax.ShapeDtypeStruct((B, dout_store), out_dtype),
            grid=grid,
            in_specs=in_specs,
            out_specs=pl.BlockSpec((bm, dout_store), lambda i: (i, 0)),
            compiler_params=pltpu.CompilerParams(
                dimension_semantics=("parallel",),
                vmem_limit_bytes=vmem_limit),
            cost_estimate=cost,
        )

    try:
        # Single-buffer the resident weights (they never re-fetch): halves their
        # VMEM footprint, which matters most under v7x's 64 MiB VMEM.
        out = jax.block_until_ready(build_call(pl.Buffered(1), 1)(*flat_inputs))
    except Exception:
        # Fallback: default double-buffering (still correct, just 2x weight VMEM).
        out = build_call(None, 2)(*flat_inputs)

    if dout_store != orig_dout:
        out = out[:, :orig_dout]
    return out


def init_params(layer_sizes, key):
    """Deterministic parameter init (PyTorch nn.Linear-style uniform bounds)."""
    params = []
    for i in range(len(layer_sizes) - 1):
        din, dout = layer_sizes[i], layer_sizes[i + 1]
        key, kw, kb = jax.random.split(key, 3)
        bound = 1.0 / jnp.sqrt(din)
        # Stored already transposed: [din, dout] so the kernel does x @ W.
        w = jax.random.uniform(kw, (din, dout), jnp.float32, -bound, bound)
        b = jax.random.uniform(kb, (1, dout), jnp.float32, -bound, bound)
        params.append((w, b))
    return params


def _reference_forward(x, params, use_shortcut: bool, matmul_dtype=jnp.float32):
    """Pure-JAX reference mirroring the PyTorch module (optionally with the
    kernel's bf16-matmul / f32-accumulate precision pattern)."""
    for w, b in params:
        h = jnp.dot(x.astype(matmul_dtype), w.astype(matmul_dtype),
                    preferred_element_type=jnp.float32) + b
        y = _gelu_tanh(h)
        if use_shortcut and x.shape == y.shape:
            x = x + y
        else:
            x = y
    return x


if __name__ == "__main__":
    # Lane-dense hidden widths (128 = full TPU lane width); last layer narrows,
    # so the residual shortcut is skipped there exactly as in the PyTorch module
    # (and the kernel lane-pads that final store to 128, slicing outside).
    layer_sizes = [128, 128, 128, 128, 128, 64]
    use_shortcut = True
    batch = 8

    key = jax.random.PRNGKey(0)
    kx, kp = jax.random.split(key)
    x = jax.random.normal(kx, (batch, layer_sizes[0]), dtype=jnp.float32)
    params = init_params(layer_sizes, kp)

    out = example_deep_neural_network(x, params, use_shortcut)
    out = jax.block_until_ready(out)
    assert out.shape == (batch, layer_sizes[-1]), out.shape

    # Primary check: reference with the SAME precision choices as the kernel
    # (bf16 MXU inputs, f32 accumulate / bias / GELU / residual).
    ref_mixed = _reference_forward(x, params, use_shortcut,
                                   matmul_dtype=jnp.bfloat16)
    assert jnp.allclose(out, ref_mixed, atol=5e-3, rtol=5e-3), float(
        jnp.max(jnp.abs(out - ref_mixed)))

    # Sanity check vs full-f32 math (looser tolerance: bf16 has ~3 digits).
    ref_f32 = _reference_forward(x, params, use_shortcut,
                                 matmul_dtype=jnp.float32)
    assert jnp.allclose(out, ref_f32, atol=5e-2, rtol=5e-2), float(
        jnp.max(jnp.abs(out - ref_f32)))

    print("KERNEL_OK")
</pallas_src>

<mosaic_0001>
module attributes {stable_mosaic.version = 11 : i64} {
  func.func @_fused_mlp_kernel(%arg0: i32, %arg1: memref<8x128xbf16, #tpu.memory_space<vmem>>, %arg2: memref<128x128xbf16, #tpu.memory_space<vmem>>, %arg3: memref<1x128xf32, #tpu.memory_space<vmem>>, %arg4: memref<128x128xbf16, #tpu.memory_space<vmem>>, %arg5: memref<1x128xf32, #tpu.memory_space<vmem>>, %arg6: memref<128x128xbf16, #tpu.memory_space<vmem>>, %arg7: memref<1x128xf32, #tpu.memory_space<vmem>>, %arg8: memref<128x128xbf16, #tpu.memory_space<vmem>>, %arg9: memref<1x128xf32, #tpu.memory_space<vmem>>, %arg10: memref<128x128xbf16, #tpu.memory_space<vmem>>, %arg11: memref<1x128xf32, #tpu.memory_space<vmem>>, %arg12: memref<8x128xf32, #tpu.memory_space<vmem>>) attributes {dimension_semantics = [#tpu.dimension_semantics<parallel>], iteration_bounds = array<i64: 1>, scalar_prefetch = 0 : i64, scratch_operands = 0 : i64, tpu.core_type = #tpu.core_type<tc>, window_params = [{transform_indices = @transform_0, window_bounds = array<i64: 8, 128>}, {pipeline_mode = #tpu.pipeline_mode<synchronous>, transform_indices = @transform_1, window_bounds = array<i64: 128, 128>}, {pipeline_mode = #tpu.pipeline_mode<synchronous>, transform_indices = @transform_2, window_bounds = array<i64: 1, 128>}, {pipeline_mode = #tpu.pipeline_mode<synchronous>, transform_indices = @transform_3, window_bounds = array<i64: 128, 128>}, {pipeline_mode = #tpu.pipeline_mode<synchronous>, transform_indices = @transform_4, window_bounds = array<i64: 1, 128>}, {pipeline_mode = #tpu.pipeline_mode<synchronous>, transform_indices = @transform_5, window_bounds = array<i64: 128, 128>}, {pipeline_mode = #tpu.pipeline_mode<synchronous>, transform_indices = @transform_6, window_bounds = array<i64: 1, 128>}, {pipeline_mode = #tpu.pipeline_mode<synchronous>, transform_indices = @transform_7, window_bounds = array<i64: 128, 128>}, {pipeline_mode = #tpu.pipeline_mode<synchronous>, transform_indices = @transform_8, window_bounds = array<i64: 1, 128>}, {pipeline_mode = #tpu.pipeline_mode<synchronous>, transform_indices = @transform_9, window_bounds = array<i64: 128, 128>}, {pipeline_mode = #tpu.pipeline_mode<synchronous>, transform_indices = @transform_10, window_bounds = array<i64: 1, 128>}, {transform_indices = @transform_11, window_bounds = array<i64: 8, 128>}]} {
    %c0 = arith.constant 0 : index
    %c0_0 = arith.constant 0 : index
    %0 = vector.load %arg1[%c0, %c0_0] : memref<8x128xbf16, #tpu.memory_space<vmem>>, vector<8x128xbf16>
    %1 = arith.extf %0 : vector<8x128xbf16> to vector<8x128xf32>
    %c0_1 = arith.constant 0 : index
    %c0_2 = arith.constant 0 : index
    %2 = vector.load %arg2[%c0_1, %c0_2] : memref<128x128xbf16, #tpu.memory_space<vmem>>, vector<128x128xbf16>
    %c0_3 = arith.constant 0 : index
    %c0_4 = arith.constant 0 : index
    %3 = vector.load %arg3[%c0_3, %c0_4] : memref<1x128xf32, #tpu.memory_space<vmem>>, vector<1x128xf32>
    %4 = arith.truncf %1 : vector<8x128xf32> to vector<8x128xbf16>
    %cst = arith.constant dense<0.000000e+00> : vector<8x128xf32>
    %5 = tpu.matmul %4, %2, %cst {dimension_numbers = #tpu.dot_dimension_numbers<[1], [0], [0], [1], [0, 0, 1, 1], [], []>} : vector<8x128xbf16>, vector<128x128xbf16>, vector<8x128xf32> -> vector<8x128xf32>
    %6 = vector.broadcast %3 : vector<1x128xf32> to vector<8x128xf32>
    %7 = arith.addf %5, %6 : vector<8x128xf32>
    %cst_5 = arith.constant 5.000000e-01 : f32
    %8 = vector.broadcast %cst_5 : f32 to vector<8x128xf32>
    %9 = arith.mulf %8, %7 : vector<8x128xf32>
    %cst_6 = arith.constant 0.636619746 : f32
    %10 = math.sqrt %cst_6 : f32
    %cst_7 = arith.constant 4.471500e-02 : f32
    %11 = vector.broadcast %cst_7 : f32 to vector<8x128xf32>
    %12 = arith.mulf %11, %7 : vector<8x128xf32>
    %13 = arith.mulf %12, %7 : vector<8x128xf32>
    %14 = arith.mulf %13, %7 : vector<8x128xf32>
    %15 = arith.addf %7, %14 : vector<8x128xf32>
    %16 = vector.broadcast %10 : f32 to vector<8x128xf32>
    %17 = arith.mulf %16, %15 : vector<8x128xf32>
    %18 = math.tanh %17 : vector<8x128xf32>
    %cst_8 = arith.constant 1.000000e+00 : f32
    %19 = vector.broadcast %cst_8 : f32 to vector<8x128xf32>
    %20 = arith.addf %19, %18 : vector<8x128xf32>
    %21 = arith.mulf %9, %20 : vector<8x128xf32>
    %22 = arith.addf %1, %21 : vector<8x128xf32>
    %c0_9 = arith.constant 0 : index
    %c0_10 = arith.constant 0 : index
    %23 = vector.load %arg4[%c0_9, %c0_10] : memref<128x128xbf16, #tpu.memory_space<vmem>>, vector<128x128xbf16>
    %c0_11 = arith.constant 0 : index
    %c0_12 = arith.constant 0 : index
    %24 = vector.load %arg5[%c0_11, %c0_12] : memref<1x128xf32, #tpu.memory_space<vmem>>, vector<1x128xf32>
    %25 = arith.truncf %22 : vector<8x128xf32> to vector<8x128xbf16>
    %cst_13 = arith.constant dense<0.000000e+00> : vector<8x128xf32>
    %26 = tpu.matmul %25, %23, %cst_13 {dimension_numbers = #tpu.dot_dimension_numbers<[1], [0], [0], [1], [0, 0, 1, 1], [], []>} : vector<8x128xbf16>, vector<128x128xbf16>, vector<8x128xf32> -> vector<8x128xf32>
    %27 = vector.broadcast %24 : vector<1x128xf32> to vector<8x128xf32>
    %28 = arith.addf %26, %27 : vector<8x128xf32>
    %cst_14 = arith.constant 5.000000e-01 : f32
    %29 = vector.broadcast %cst_14 : f32 to vector<8x128xf32>
    %30 = arith.mulf %29, %28 : vector<8x128xf32>
    %cst_15 = arith.constant 0.636619746 : f32
    %31 = math.sqrt %cst_15 : f32
    %cst_16 = arith.constant 4.471500e-02 : f32
    %32 = vector.broadcast %cst_16 : f32 to vector<8x128xf32>
    %33 = arith.mulf %32, %28 : vector<8x128xf32>
    %34 = arith.mulf %33, %28 : vector<8x128xf32>
    %35 = arith.mulf %34, %28 : vector<8x128xf32>
    %36 = arith.addf %28, %35 : vector<8x128xf32>
    %37 = vector.broadcast %31 : f32 to vector<8x128xf32>
    %38 = arith.mulf %37, %36 : vector<8x128xf32>
    %39 = math.tanh %38 : vector<8x128xf32>
    %cst_17 = arith.constant 1.000000e+00 : f32
    %40 = vector.broadcast %cst_17 : f32 to vector<8x128xf32>
    %41 = arith.addf %40, %39 : vector<8x128xf32>
    %42 = arith.mulf %30, %41 : vector<8x128xf32>
    %43 = arith.addf %22, %42 : vector<8x128xf32>
    %c0_18 = arith.constant 0 : index
    %c0_19 = arith.constant 0 : index
    %44 = vector.load %arg6[%c0_18, %c0_19] : memref<128x128xbf16, #tpu.memory_space<vmem>>, vector<128x128xbf16>
    %c0_20 = arith.constant 0 : index
    %c0_21 = arith.constant 0 : index
    %45 = vector.load %arg7[%c0_20, %c0_21] : memref<1x128xf32, #tpu.memory_space<vmem>>, vector<1x128xf32>
    %46 = arith.truncf %43 : vector<8x128xf32> to vector<8x128xbf16>
    %cst_22 = arith.constant dense<0.000000e+00> : vector<8x128xf32>
    %47 = tpu.matmul %46, %44, %cst_22 {dimension_numbers = #tpu.dot_dimension_numbers<[1], [0], [0], [1], [0, 0, 1, 1], [], []>} : vector<8x128xbf16>, vector<128x128xbf16>, vector<8x128xf32> -> vector<8x128xf32>
    %48 = vector.broadcast %45 : vector<1x128xf32> to vector<8x128xf32>
    %49 = arith.addf %47, %48 : vector<8x128xf32>
    %cst_23 = arith.constant 5.000000e-01 : f32
    %50 = vector.broadcast %cst_23 : f32 to vector<8x128xf32>
    %51 = arith.mulf %50, %49 : vector<8x128xf32>
    %cst_24 = arith.constant 0.636619746 : f32
    %52 = math.sqrt %cst_24 : f32
    %cst_25 = arith.constant 4.471500e-02 : f32
    %53 = vector.broadcast %cst_25 : f32 to vector<8x128xf32>
    %54 = arith.mulf %53, %49 : vector<8x128xf32>
    %55 = arith.mulf %54, %49 : vector<8x128xf32>
    %56 = arith.mulf %55, %49 : vector<8x128xf32>
    %57 = arith.addf %49, %56 : vector<8x128xf32>
    %58 = vector.broadcast %52 : f32 to vector<8x128xf32>
    %59 = arith.mulf %58, %57 : vector<8x128xf32>
    %60 = math.tanh %59 : vector<8x128xf32>
    %cst_26 = arith.constant 1.000000e+00 : f32
    %61 = vector.broadcast %cst_26 : f32 to vector<8x128xf32>
    %62 = arith.addf %61, %60 : vector<8x128xf32>
    %63 = arith.mulf %51, %62 : vector<8x128xf32>
    %64 = arith.addf %43, %63 : vector<8x128xf32>
    %c0_27 = arith.constant 0 : index
    %c0_28 = arith.constant 0 : index
    %65 = vector.load %arg8[%c0_27, %c0_28] : memref<128x128xbf16, #tpu.memory_space<vmem>>, vector<128x128xbf16>
    %c0_29 = arith.constant 0 : index
    %c0_30 = arith.constant 0 : index
    %66 = vector.load %arg9[%c0_29, %c0_30] : memref<1x128xf32, #tpu.memory_space<vmem>>, vector<1x128xf32>
    %67 = arith.truncf %64 : vector<8x128xf32> to vector<8x128xbf16>
    %cst_31 = arith.constant dense<0.000000e+00> : vector<8x128xf32>
    %68 = tpu.matmul %67, %65, %cst_31 {dimension_numbers = #tpu.dot_dimension_numbers<[1], [0], [0], [1], [0, 0, 1, 1], [], []>} : vector<8x128xbf16>, vector<128x128xbf16>, vector<8x128xf32> -> vector<8x128xf32>
    %69 = vector.broadcast %66 : vector<1x128xf32> to vector<8x128xf32>
    %70 = arith.addf %68, %69 : vector<8x128xf32>
    %cst_32 = arith.constant 5.000000e-01 : f32
    %71 = vector.broadcast %cst_32 : f32 to vector<8x128xf32>
    %72 = arith.mulf %71, %70 : vector<8x128xf32>
    %cst_33 = arith.constant 0.636619746 : f32
    %73 = math.sqrt %cst_33 : f32
    %cst_34 = arith.constant 4.471500e-02 : f32
    %74 = vector.broadcast %cst_34 : f32 to vector<8x128xf32>
    %75 = arith.mulf %74, %70 : vector<8x128xf32>
    %76 = arith.mulf %75, %70 : vector<8x128xf32>
    %77 = arith.mulf %76, %70 : vector<8x128xf32>
    %78 = arith.addf %70, %77 : vector<8x128xf32>
    %79 = vector.broadcast %73 : f32 to vector<8x128xf32>
    %80 = arith.mulf %79, %78 : vector<8x128xf32>
    %81 = math.tanh %80 : vector<8x128xf32>
    %cst_35 = arith.constant 1.000000e+00 : f32
    %82 = vector.broadcast %cst_35 : f32 to vector<8x128xf32>
    %83 = arith.addf %82, %81 : vector<8x128xf32>
    %84 = arith.mulf %72, %83 : vector<8x128xf32>
    %85 = arith.addf %64, %84 : vector<8x128xf32>
    %c0_36 = arith.constant 0 : index
    %c0_37 = arith.constant 0 : index
    %86 = vector.load %arg10[%c0_36, %c0_37] : memref<128x128xbf16, #tpu.memory_space<vmem>>, vector<128x128xbf16>
    %c0_38 = arith.constant 0 : index
    %c0_39 = arith.constant 0 : index
    %87 = vector.load %arg11[%c0_38, %c0_39] : memref<1x128xf32, #tpu.memory_space<vmem>>, vector<1x128xf32>
    %88 = arith.truncf %85 : vector<8x128xf32> to vector<8x128xbf16>
    %cst_40 = arith.constant dense<0.000000e+00> : vector<8x128xf32>
    %89 = tpu.matmul %88, %86, %cst_40 {dimension_numbers = #tpu.dot_dimension_numbers<[1], [0], [0], [1], [0, 0, 1, 1], [], []>} : vector<8x128xbf16>, vector<128x128xbf16>, vector<8x128xf32> -> vector<8x128xf32>
    %90 = vector.broadcast %87 : vector<1x128xf32> to vector<8x128xf32>
    %91 = arith.addf %89, %90 : vector<8x128xf32>
    %cst_41 = arith.constant 5.000000e-01 : f32
    %92 = vector.broadcast %cst_41 : f32 to vector<8x128xf32>
    %93 = arith.mulf %92, %91 : vector<8x128xf32>
    %cst_42 = arith.constant 0.636619746 : f32
    %94 = math.sqrt %cst_42 : f32
    %cst_43 = arith.constant 4.471500e-02 : f32
    %95 = vector.broadcast %cst_43 : f32 to vector<8x128xf32>
    %96 = arith.mulf %95, %91 : vector<8x128xf32>
    %97 = arith.mulf %96, %91 : vector<8x128xf32>
    %98 = arith.mulf %97, %91 : vector<8x128xf32>
    %99 = arith.addf %91, %98 : vector<8x128xf32>
    %100 = vector.broadcast %94 : f32 to vector<8x128xf32>
    %101 = arith.mulf %100, %99 : vector<8x128xf32>
    %102 = math.tanh %101 : vector<8x128xf32>
    %cst_44 = arith.constant 1.000000e+00 : f32
    %103 = vector.broadcast %cst_44 : f32 to vector<8x128xf32>
    %104 = arith.addf %103, %102 : vector<8x128xf32>
    %105 = arith.mulf %93, %104 : vector<8x128xf32>
    %c0_45 = arith.constant 0 : index
    %c0_46 = arith.constant 0 : index
    %106 = vector.load %arg12[%c0_45, %c0_46] : memref<8x128xf32, #tpu.memory_space<vmem>>, vector<8x128xf32>
    tpu.vector_store %arg12[%c0_45, %c0_46], %105 {strides = array<i32>} : memref<8x128xf32, #tpu.memory_space<vmem>>, vector<8x128xf32>,
    return
  }
  func.func @transform_0(%arg0: i32) -> (i32, i32) {
    %c0_i32 = arith.constant 0 : i32
    %c0_i32_0 = arith.constant 0 : i32
    return %arg0, %c0_i32 : i32, i32
  }
  func.func @transform_1(%arg0: i32) -> (i32, i32) {
    %c0_i32 = arith.constant 0 : i32
    %c0_i32_0 = arith.constant 0 : i32
    %c0_i32_1 = arith.constant 0 : i32
    return %c0_i32, %c0_i32_0 : i32, i32
  }
  func.func @transform_2(%arg0: i32) -> (i32, i32) {
    %c0_i32 = arith.constant 0 : i32
    %c0_i32_0 = arith.constant 0 : i32
    %c0_i32_1 = arith.constant 0 : i32
    return %c0_i32, %c0_i32_0 : i32, i32
  }
  func.func @transform_3(%arg0: i32) -> (i32, i32) {
    %c0_i32 = arith.constant 0 : i32
    %c0_i32_0 = arith.constant 0 : i32
    %c0_i32_1 = arith.constant 0 : i32
    return %c0_i32, %c0_i32_0 : i32, i32
  }
  func.func @transform_4(%arg0: i32) -> (i32, i32) {
    %c0_i32 = arith.constant 0 : i32
    %c0_i32_0 = arith.constant 0 : i32
    %c0_i32_1 = arith.constant 0 : i32
    return %c0_i32, %c0_i32_0 : i32, i32
  }
  func.func @transform_5(%arg0: i32) -> (i32, i32) {
    %c0_i32 = arith.constant 0 : i32
    %c0_i32_0 = arith.constant 0 : i32
    %c0_i32_1 = arith.constant 0 : i32
    return %c0_i32, %c0_i32_0 : i32, i32
  }
  func.func @transform_6(%arg0: i32) -> (i32, i32) {
    %c0_i32 = arith.constant 0 : i32
    %c0_i32_0 = arith.constant 0 : i32
    %c0_i32_1 = arith.constant 0 : i32
    return %c0_i32, %c0_i32_0 : i32, i32
  }
  func.func @transform_7(%arg0: i32) -> (i32, i32) {
    %c0_i32 = arith.constant 0 : i32
    %c0_i32_0 = arith.constant 0 : i32
    %c0_i32_1 = arith.constant 0 : i32
    return %c0_i32, %c0_i32_0 : i32, i32
  }
  func.func @transform_8(%arg0: i32) -> (i32, i32) {
    %c0_i32 = arith.constant 0 : i32
    %c0_i32_0 = arith.constant 0 : i32
    %c0_i32_1 = arith.constant 0 : i32
    return %c0_i32, %c0_i32_0 : i32, i32
  }
  func.func @transform_9(%arg0: i32) -> (i32, i32) {
    %c0_i32 = arith.constant 0 : i32
    %c0_i32_0 = arith.constant 0 : i32
    %c0_i32_1 = arith.constant 0 : i32
    return %c0_i32, %c0_i32_0 : i32, i32
  }
  func.func @transform_10(%arg0: i32) -> (i32, i32) {
    %c0_i32 = arith.constant 0 : i32
    %c0_i32_0 = arith.constant 0 : i32
    %c0_i32_1 = arith.constant 0 : i32
    return %c0_i32, %c0_i32_0 : i32, i32
  }
  func.func @transform_11(%arg0: i32) -> (i32, i32) {
    %c0_i32 = arith.constant 0 : i32
    %c0_i32_0 = arith.constant 0 : i32
    return %arg0, %c0_i32 : i32, i32
  }
}

module attributes {stable_mosaic.version = 11 : i64} {
  func.func @_fused_mlp_kernel(%arg0: i32, %arg1: memref<8x128xbf16, #tpu.memory_space<vmem>>, %arg2: memref<128x128xbf16, #tpu.memory_space<vmem>>, %arg3: memref<1x128xf32, #tpu.memory_space<vmem>>, %arg4: memref<128x128xbf16, #tpu.memory_space<vmem>>, %arg5: memref<1x128xf32, #tpu.memory_space<vmem>>, %arg6: memref<128x128xbf16, #tpu.memory_space<vmem>>, %arg7: memref<1x128xf32, #tpu.memory_space<vmem>>, %arg8: memref<128x128xbf16, #tpu.memory_space<vmem>>, %arg9: memref<1x128xf32, #tpu.memory_space<vmem>>, %arg10: memref<128x128xbf16, #tpu.memory_space<vmem>>, %arg11: memref<1x128xf32, #tpu.memory_space<vmem>>, %arg12: memref<8x128xf32, #tpu.memory_space<vmem>>) attributes {dimension_semantics = [#tpu.dimension_semantics<parallel>], iteration_bounds = array<i64: 1>, scalar_prefetch = 0 : i64, scratch_operands = 0 : i64, tpu.core_type = #tpu.core_type<tc>, window_params = [{transform_indices = @transform_0, window_bounds = array<i64: 8, 128>}, {pipeline_mode = #tpu.pipeline_mode<synchronous>, transform_indices = @transform_1, window_bounds = array<i64: 128, 128>}, {pipeline_mode = #tpu.pipeline_mode<synchronous>, transform_indices = @transform_2, window_bounds = array<i64: 1, 128>}, {pipeline_mode = #tpu.pipeline_mode<synchronous>, transform_indices = @transform_3, window_bounds = array<i64: 128, 128>}, {pipeline_mode = #tpu.pipeline_mode<synchronous>, transform_indices = @transform_4, window_bounds = array<i64: 1, 128>}, {pipeline_mode = #tpu.pipeline_mode<synchronous>, transform_indices = @transform_5, window_bounds = array<i64: 128, 128>}, {pipeline_mode = #tpu.pipeline_mode<synchronous>, transform_indices = @transform_6, window_bounds = array<i64: 1, 128>}, {pipeline_mode = #tpu.pipeline_mode<synchronous>, transform_indices = @transform_7, window_bounds = array<i64: 128, 128>}, {pipeline_mode = #tpu.pipeline_mode<synchronous>, transform_indices = @transform_8, window_bounds = array<i64: 1, 128>}, {pipeline_mode = #tpu.pipeline_mode<synchronous>, transform_indices = @transform_9, window_bounds = array<i64: 128, 128>}, {pipeline_mode = #tpu.pipeline_mode<synchronous>, transform_indices = @transform_10, window_bounds = array<i64: 1, 128>}, {transform_indices = @transform_11, window_bounds = array<i64: 8, 128>}]} {
    %c0 = arith.constant 0 : index
    %c0_0 = arith.constant 0 : index
    %0 = vector.load %arg1[%c0, %c0_0] : memref<8x128xbf16, #tpu.memory_space<vmem>>, vector<8x128xbf16>
    %1 = arith.extf %0 : vector<8x128xbf16> to vector<8x128xf32>
    %c0_1 = arith.constant 0 : index
    %c0_2 = arith.constant 0 : index
    %2 = vector.load %arg2[%c0_1, %c0_2] : memref<128x128xbf16, #tpu.memory_space<vmem>>, vector<128x128xbf16>
    %c0_3 = arith.constant 0 : index
    %c0_4 = arith.constant 0 : index
    %3 = vector.load %arg3[%c0_3, %c0_4] : memref<1x128xf32, #tpu.memory_space<vmem>>, vector<1x128xf32>
    %4 = arith.truncf %1 : vector<8x128xf32> to vector<8x128xbf16>
    %cst = arith.constant dense<0.000000e+00> : vector<8x128xf32>
    %5 = tpu.matmul %4, %2, %cst {dimension_numbers = #tpu.dot_dimension_numbers<[1], [0], [0], [1], [0, 0, 1, 1], [], []>} : vector<8x128xbf16>, vector<128x128xbf16>, vector<8x128xf32> -> vector<8x128xf32>
    %6 = vector.broadcast %3 : vector<1x128xf32> to vector<8x128xf32>
    %7 = arith.addf %5, %6 : vector<8x128xf32>
    %cst_5 = arith.constant 5.000000e-01 : f32
    %8 = vector.broadcast %cst_5 : f32 to vector<8x128xf32>
    %9 = arith.mulf %8, %7 : vector<8x128xf32>
    %cst_6 = arith.constant 0.636619746 : f32
    %10 = math.sqrt %cst_6 : f32
    %cst_7 = arith.constant 4.471500e-02 : f32
    %11 = vector.broadcast %cst_7 : f32 to vector<8x128xf32>
    %12 = arith.mulf %11, %7 : vector<8x128xf32>
    %13 = arith.mulf %12, %7 : vector<8x128xf32>
    %14 = arith.mulf %13, %7 : vector<8x128xf32>
    %15 = arith.addf %7, %14 : vector<8x128xf32>
    %16 = vector.broadcast %10 : f32 to vector<8x128xf32>
    %17 = arith.mulf %16, %15 : vector<8x128xf32>
    %18 = math.tanh %17 : vector<8x128xf32>
    %cst_8 = arith.constant 1.000000e+00 : f32
    %19 = vector.broadcast %cst_8 : f32 to vector<8x128xf32>
    %20 = arith.addf %19, %18 : vector<8x128xf32>
    %21 = arith.mulf %9, %20 : vector<8x128xf32>
    %22 = arith.addf %1, %21 : vector<8x128xf32>
    %c0_9 = arith.constant 0 : index
    %c0_10 = arith.constant 0 : index
    %23 = vector.load %arg4[%c0_9, %c0_10] : memref<128x128xbf16, #tpu.memory_space<vmem>>, vector<128x128xbf16>
    %c0_11 = arith.constant 0 : index
    %c0_12 = arith.constant 0 : index
    %24 = vector.load %arg5[%c0_11, %c0_12] : memref<1x128xf32, #tpu.memory_space<vmem>>, vector<1x128xf32>
    %25 = arith.truncf %22 : vector<8x128xf32> to vector<8x128xbf16>
    %cst_13 = arith.constant dense<0.000000e+00> : vector<8x128xf32>
    %26 = tpu.matmul %25, %23, %cst_13 {dimension_numbers = #tpu.dot_dimension_numbers<[1], [0], [0], [1], [0, 0, 1, 1], [], []>} : vector<8x128xbf16>, vector<128x128xbf16>, vector<8x128xf32> -> vector<8x128xf32>
    %27 = vector.broadcast %24 : vector<1x128xf32> to vector<8x128xf32>
    %28 = arith.addf %26, %27 : vector<8x128xf32>
    %cst_14 = arith.constant 5.000000e-01 : f32
    %29 = vector.broadcast %cst_14 : f32 to vector<8x128xf32>
    %30 = arith.mulf %29, %28 : vector<8x128xf32>
    %cst_15 = arith.constant 0.636619746 : f32
    %31 = math.sqrt %cst_15 : f32
    %cst_16 = arith.constant 4.471500e-02 : f32
    %32 = vector.broadcast %cst_16 : f32 to vector<8x128xf32>
    %33 = arith.mulf %32, %28 : vector<8x128xf32>
    %34 = arith.mulf %33, %28 : vector<8x128xf32>
    %35 = arith.mulf %34, %28 : vector<8x128xf32>
    %36 = arith.addf %28, %35 : vector<8x128xf32>
    %37 = vector.broadcast %31 : f32 to vector<8x128xf32>
    %38 = arith.mulf %37, %36 : vector<8x128xf32>
    %39 = math.tanh %38 : vector<8x128xf32>
    %cst_17 = arith.constant 1.000000e+00 : f32
    %40 = vector.broadcast %cst_17 : f32 to vector<8x128xf32>
    %41 = arith.addf %40, %39 : vector<8x128xf32>
    %42 = arith.mulf %30, %41 : vector<8x128xf32>
    %43 = arith.addf %22, %42 : vector<8x128xf32>
    %c0_18 = arith.constant 0 : index
    %c0_19 = arith.constant 0 : index
    %44 = vector.load %arg6[%c0_18, %c0_19] : memref<128x128xbf16, #tpu.memory_space<vmem>>, vector<128x128xbf16>
    %c0_20 = arith.constant 0 : index
    %c0_21 = arith.constant 0 : index
    %45 = vector.load %arg7[%c0_20, %c0_21] : memref<1x128xf32, #tpu.memory_space<vmem>>, vector<1x128xf32>
    %46 = arith.truncf %43 : vector<8x128xf32> to vector<8x128xbf16>
    %cst_22 = arith.constant dense<0.000000e+00> : vector<8x128xf32>
    %47 = tpu.matmul %46, %44, %cst_22 {dimension_numbers = #tpu.dot_dimension_numbers<[1], [0], [0], [1], [0, 0, 1, 1], [], []>} : vector<8x128xbf16>, vector<128x128xbf16>, vector<8x128xf32> -> vector<8x128xf32>
    %48 = vector.broadcast %45 : vector<1x128xf32> to vector<8x128xf32>
    %49 = arith.addf %47, %48 : vector<8x128xf32>
    %cst_23 = arith.constant 5.000000e-01 : f32
    %50 = vector.broadcast %cst_23 : f32 to vector<8x128xf32>
    %51 = arith.mulf %50, %49 : vector<8x128xf32>
    %cst_24 = arith.constant 0.636619746 : f32
    %52 = math.sqrt %cst_24 : f32
    %cst_25 = arith.constant 4.471500e-02 : f32
    %53 = vector.broadcast %cst_25 : f32 to vector<8x128xf32>
    %54 = arith.mulf %53, %49 : vector<8x128xf32>
    %55 = arith.mulf %54, %49 : vector<8x128xf32>
    %56 = arith.mulf %55, %49 : vector<8x128xf32>
    %57 = arith.addf %49, %56 : vector<8x128xf32>
    %58 = vector.broadcast %52 : f32 to vector<8x128xf32>
    %59 = arith.mulf %58, %57 : vector<8x128xf32>
    %60 = math.tanh %59 : vector<8x128xf32>
    %cst_26 = arith.constant 1.000000e+00 : f32
    %61 = vector.broadcast %cst_26 : f32 to vector<8x128xf32>
    %62 = arith.addf %61, %60 : vector<8x128xf32>
    %63 = arith.mulf %51, %62 : vector<8x128xf32>
    %64 = arith.addf %43, %63 : vector<8x128xf32>
    %c0_27 = arith.constant 0 : index
    %c0_28 = arith.constant 0 : index
    %65 = vector.load %arg8[%c0_27, %c0_28] : memref<128x128xbf16, #tpu.memory_space<vmem>>, vector<128x128xbf16>
    %c0_29 = arith.constant 0 : index
    %c0_30 = arith.constant 0 : index
    %66 = vector.load %arg9[%c0_29, %c0_30] : memref<1x128xf32, #tpu.memory_space<vmem>>, vector<1x128xf32>
    %67 = arith.truncf %64 : vector<8x128xf32> to vector<8x128xbf16>
    %cst_31 = arith.constant dense<0.000000e+00> : vector<8x128xf32>
    %68 = tpu.matmul %67, %65, %cst_31 {dimension_numbers = #tpu.dot_dimension_numbers<[1], [0], [0], [1], [0, 0, 1, 1], [], []>} : vector<8x128xbf16>, vector<128x128xbf16>, vector<8x128xf32> -> vector<8x128xf32>
    %69 = vector.broadcast %66 : vector<1x128xf32> to vector<8x128xf32>
    %70 = arith.addf %68, %69 : vector<8x128xf32>
    %cst_32 = arith.constant 5.000000e-01 : f32
    %71 = vector.broadcast %cst_32 : f32 to vector<8x128xf32>
    %72 = arith.mulf %71, %70 : vector<8x128xf32>
    %cst_33 = arith.constant 0.636619746 : f32
    %73 = math.sqrt %cst_33 : f32
    %cst_34 = arith.constant 4.471500e-02 : f32
    %74 = vector.broadcast %cst_34 : f32 to vector<8x128xf32>
    %75 = arith.mulf %74, %70 : vector<8x128xf32>
    %76 = arith.mulf %75, %70 : vector<8x128xf32>
    %77 = arith.mulf %76, %70 : vector<8x128xf32>
    %78 = arith.addf %70, %77 : vector<8x128xf32>
    %79 = vector.broadcast %73 : f32 to vector<8x128xf32>
    %80 = arith.mulf %79, %78 : vector<8x128xf32>
    %81 = math.tanh %80 : vector<8x128xf32>
    %cst_35 = arith.constant 1.000000e+00 : f32
    %82 = vector.broadcast %cst_35 : f32 to vector<8x128xf32>
    %83 = arith.addf %82, %81 : vector<8x128xf32>
    %84 = arith.mulf %72, %83 : vector<8x128xf32>
    %85 = arith.addf %64, %84 : vector<8x128xf32>
    %c0_36 = arith.constant 0 : index
    %c0_37 = arith.constant 0 : index
    %86 = vector.load %arg10[%c0_36, %c0_37] : memref<128x128xbf16, #tpu.memory_space<vmem>>, vector<128x128xbf16>
    %c0_38 = arith.constant 0 : index
    %c0_39 = arith.constant 0 : index
    %87 = vector.load %arg11[%c0_38, %c0_39] : memref<1x128xf32, #tpu.memory_space<vmem>>, vector<1x128xf32>
    %88 = arith.truncf %85 : vector<8x128xf32> to vector<8x128xbf16>
    %cst_40 = arith.constant dense<0.000000e+00> : vector<8x128xf32>
    %89 = tpu.matmul %88, %86, %cst_40 {dimension_numbers = #tpu.dot_dimension_numbers<[1], [0], [0], [1], [0, 0, 1, 1], [], []>} : vector<8x128xbf16>, vector<128x128xbf16>, vector<8x128xf32> -> vector<8x128xf32>
    %90 = vector.broadcast %87 : vector<1x128xf32> to vector<8x128xf32>
    %91 = arith.addf %89, %90 : vector<8x128xf32>
    %cst_41 = arith.constant 5.000000e-01 : f32
    %92 = vector.broadcast %cst_41 : f32 to vector<8x128xf32>
    %93 = arith.mulf %92, %91 : vector<8x128xf32>
    %cst_42 = arith.constant 0.636619746 : f32
    %94 = math.sqrt %cst_42 : f32
    %cst_43 = arith.constant 4.471500e-02 : f32
    %95 = vector.broadcast %cst_43 : f32 to vector<8x128xf32>
    %96 = arith.mulf %95, %91 : vector<8x128xf32>
    %97 = arith.mulf %96, %91 : vector<8x128xf32>
    %98 = arith.mulf %97, %91 : vector<8x128xf32>
    %99 = arith.addf %91, %98 : vector<8x128xf32>
    %100 = vector.broadcast %94 : f32 to vector<8x128xf32>
    %101 = arith.mulf %100, %99 : vector<8x128xf32>
    %102 = math.tanh %101 : vector<8x128xf32>
    %cst_44 = arith.constant 1.000000e+00 : f32
    %103 = vector.broadcast %cst_44 : f32 to vector<8x128xf32>
    %104 = arith.addf %103, %102 : vector<8x128xf32>
    %105 = arith.mulf %93, %104 : vector<8x128xf32>
    %c0_45 = arith.constant 0 : index
    %c0_46 = arith.constant 0 : index
    %106 = vector.load %arg12[%c0_45, %c0_46] : memref<8x128xf32, #tpu.memory_space<vmem>>, vector<8x128xf32>
    tpu.vector_store %arg12[%c0_45, %c0_46], %105 {strides = array<i32>} : memref<8x128xf32, #tpu.memory_space<vmem>>, vector<8x128xf32>,
    return
  }
  func.func @transform_0(%arg0: i32) -> (i32, i32) {
    %c0_i32 = arith.constant 0 : i32
    %c0_i32_0 = arith.constant 0 : i32
    return %arg0, %c0_i32 : i32, i32
  }
  func.func @transform_1(%arg0: i32) -> (i32, i32) {
    %c0_i32 = arith.constant 0 : i32
    %c0_i32_0 = arith.constant 0 : i32
    %c0_i32_1 = arith.constant 0 : i32
    return %c0_i32, %c0_i32_0 : i32, i32
  }
  func.func @transform_2(%arg0: i32) -> (i32, i32) {
    %c0_i32 = arith.constant 0 : i32
    %c0_i32_0 = arith.constant 0 : i32
    %c0_i32_1 = arith.constant 0 : i32
    return %c0_i32, %c0_i32_0 : i32, i32
  }
  func.func @transform_3(%arg0: i32) -> (i32, i32) {
    %c0_i32 = arith.constant 0 : i32
    %c0_i32_0 = arith.constant 0 : i32
    %c0_i32_1 = arith.constant 0 : i32
    return %c0_i32, %c0_i32_0 : i32, i32
  }
  func.func @transform_4(%arg0: i32) -> (i32, i32) {
    %c0_i32 = arith.constant 0 : i32
    %c0_i32_0 = arith.constant 0 : i32
    %c0_i32_1 = arith.constant 0 : i32
    return %c0_i32, %c0_i32_0 : i32, i32
  }
  func.func @transform_5(%arg0: i32) -> (i32, i32) {
    %c0_i32 = arith.constant 0 : i32
    %c0_i32_0 = arith.constant 0 : i32
    %c0_i32_1 = arith.constant 0 : i32
    return %c0_i32, %c0_i32_0 : i32, i32
  }
  func.func @transform_6(%arg0: i32) -> (i32, i32) {
    %c0_i32 = arith.constant 0 : i32
    %c0_i32_0 = arith.constant 0 : i32
    %c0_i32_1 = arith.constant 0 : i32
    return %c0_i32, %c0_i32_0 : i32, i32
  }
  func.func @transform_7(%arg0: i32) -> (i32, i32) {
    %c0_i32 = arith.constant 0 : i32
    %c0_i32_0 = arith.constant 0 : i32
    %c0_i32_1 = arith.constant 0 : i32
    return %c0_i32, %c0_i32_0 : i32, i32
  }
  func.func @transform_8(%arg0: i32) -> (i32, i32) {
    %c0_i32 = arith.constant 0 : i32
    %c0_i32_0 = arith.constant 0 : i32
    %c0_i32_1 = arith.constant 0 : i32
    return %c0_i32, %c0_i32_0 : i32, i32
  }
  func.func @transform_9(%arg0: i32) -> (i32, i32) {
    %c0_i32 = arith.constant 0 : i32
    %c0_i32_0 = arith.constant 0 : i32
    %c0_i32_1 = arith.constant 0 : i32
    return %c0_i32, %c0_i32_0 : i32, i32
  }
  func.func @transform_10(%arg0: i32) -> (i32, i32) {
    %c0_i32 = arith.constant 0 : i32
    %c0_i32_0 = arith.constant 0 : i32
    %c0_i32_1 = arith.constant 0 : i32
    return %c0_i32, %c0_i32_0 : i32, i32
  }
  func.func @transform_11(%arg0: i32) -> (i32, i32) {
    %c0_i32 = arith.constant 0 : i32
    %c0_i32_0 = arith.constant 0 : i32
    return %arg0, %c0_i32 : i32, i32
  }
}

</mosaic_0001>

<llo_original>
// kernel: tpu_custom_call.1
$region0: #{tpu_custom_call.1}
  #allocation0 [shape = 'u32[]', space=smem, size = 0x4, offset = 0x4, fixed_abs, tag = 'smem constant byte address 0x4 - core index']
  #allocation1 [shape = 'u32[72,128]{1,0:T(1,128)}', space=vmem, size = 0x9000, scoped, tag = 'internal scratch']
  %s0 = inlined_call_operand.hbm [shape: bf16[8,128], index: 0, kind: input, shape index: {}]
  %s1 = inlined_call_operand.hbm [shape: bf16[128,128], index: 1, kind: input, shape index: {}]
  %s2 = inlined_call_operand.vmem [shape: f32[1,128], index: 2, kind: input, shape index: {}]
  %s3 = inlined_call_operand.hbm [shape: bf16[128,128], index: 3, kind: input, shape index: {}]
  %s4 = inlined_call_operand.vmem [shape: f32[1,128], index: 4, kind: input, shape index: {}]
  %s5 = inlined_call_operand.hbm [shape: bf16[128,128], index: 5, kind: input, shape index: {}]
  %s6 = inlined_call_operand.vmem [shape: f32[1,128], index: 6, kind: input, shape index: {}]
  %s7 = inlined_call_operand.hbm [shape: bf16[128,128], index: 7, kind: input, shape index: {}]
  %s8 = inlined_call_operand.vmem [shape: f32[1,128], index: 8, kind: input, shape index: {}]
  %s9 = inlined_call_operand.hbm [shape: bf16[128,128], index: 9, kind: input, shape index: {}]
  %s10 = inlined_call_operand.vmem [shape: f32[1,128], index: 10, kind: input, shape index: {}]
  %s11 = inlined_call_operand.hbm [shape: f32[8,128], index: 11, kind: output, shape index: {}]
  %s12 = sld [smem:[#allocation0]]
  $region78: #{tpu_custom_call.1} parent=0
    _
  %s14 = ssub.s32 1, %s12
  %s15 = scalar_select 0, %s14, %s12
  $region1: #{tpu_custom_call.1} parent=0
    #allocation2 [shape = 'u8[2048]{0}', space=vmem, size = 0x800, scoped, tag = 'input window, operand 0, single buffered']
    #allocation3 [shape = 's32[1]{0}', space=sflag, size = 0x4, scoped, tag = 'scoped memory for tpu_custom_call.1']
    #allocation4 [shape = 's32[1]{0}', space=sflag, size = 0x4, scoped, tag = 'scoped memory for tpu_custom_call.1']
    #allocation5 [shape = 'u8[32768]{0}', space=vmem, size = 0x8000, scoped, tag = 'input window, operand 1, single buffered']
    #allocation6 [shape = 's32[1]{0}', space=sflag, size = 0x4, scoped, tag = 'scoped memory for tpu_custom_call.1']
    #allocation7 [shape = 'u8[32768]{0}', space=vmem, size = 0x8000, scoped, tag = 'input window, operand 3, single buffered']
    #allocation8 [shape = 'u8[32768]{0}', space=vmem, size = 0x8000, scoped, tag = 'input window, operand 5, single buffered']
    #allocation9 [shape = 's32[1]{0}', space=sflag, size = 0x4, scoped, tag = 'scoped memory for tpu_custom_call.1']
    #allocation10 [shape = 'u8[32768]{0}', space=vmem, size = 0x8000, scoped, tag = 'input window, operand 7, single buffered']
    #allocation11 [shape = 'u8[32768]{0}', space=vmem, size = 0x8000, scoped, tag = 'input window, operand 9, single buffered']
    #allocation12 [shape = 's32[1]{0}', space=sflag, size = 0x4, scoped, tag = 'scoped memory for tpu_custom_call.1']
    #allocation13 [shape = 'u8[4096]{0}', space=vmem, size = 0x1000, scoped, tag = 'output window, operand 0, single buffered']
    %16 = vsyncpa [#allocation3], 0
    %17 = vsyncpa [#allocation6], 0
    %18 = vsyncpa [#allocation9], 0
    %19 = vsyncpa [#allocation12], 0
    %20 = vsyncpa [#allocation4], 0
    // Predicated region
    $region2: #{tpu_custom_call.1} parent=1 // pred_check
      _
    $region3: #{tpu_custom_call.1} parent=1 // pred_check_branch
      %22 = sbr.rel (0) target = $region5
    $region4: #{tpu_custom_call.1} parent=1 // pred_region
      %24 = vsyncadd [#allocation3], 0
      %s26 = sshll.u32 %s0, 4
      %s27 = int_to_ptr.hbm [resolvable:$true] %s26
      %s28 = sshll.u32 [#allocation2], 4
      %s29 = int_to_ptr.vmem [resolvable:$true] %s28
      %31 = dma.hbm_to_vmem [thread:$0]  %s27, 64, %s29, [#allocation3]
    $region5: #{tpu_custom_call.1} parent=1 // pred_fallthru
      _
    // Predicated region
    $region6: #{tpu_custom_call.1} parent=1 // pred_check
      _
    $region7: #{tpu_custom_call.1} parent=1 // pred_check_branch
      %33 = sbr.rel (0) target = $region9
    $region8: #{tpu_custom_call.1} parent=1 // pred_region
      %35 = vsyncadd [#allocation6], 0
      %s36 = sshll.u32 %s1, 4
      %s37 = int_to_ptr.hbm [resolvable:$true] %s36
      %s38 = sshll.u32 [#allocation5], 4
      %s39 = int_to_ptr.vmem [resolvable:$true] %s38
      %44 = dma.hbm_to_vmem [thread:$0]  %s37, 1024, %s39, [#allocation6], 64, 64, 4
    $region9: #{tpu_custom_call.1} parent=1 // pred_fallthru
      _
    // Predicated region
    $region10: #{tpu_custom_call.1} parent=1 // pred_check
      _
    $region11: #{tpu_custom_call.1} parent=1 // pred_check_branch
      %46 = sbr.rel (0) target = $region13
    $region12: #{tpu_custom_call.1} parent=1 // pred_region
      _
    $region13: #{tpu_custom_call.1} parent=1 // pred_fallthru
      _
    // Predicated region
    $region14: #{tpu_custom_call.1} parent=1 // pred_check
      _
    $region15: #{tpu_custom_call.1} parent=1 // pred_check_branch
      %48 = sbr.rel (0) target = $region17
    $region16: #{tpu_custom_call.1} parent=1 // pred_region
      %50 = vsyncadd [#allocation6], 0
      %s51 = sshll.u32 %s3, 4
      %s52 = int_to_ptr.hbm [resolvable:$true] %s51
      %s53 = sshll.u32 [#allocation7], 4
      %s54 = int_to_ptr.vmem [resolvable:$true] %s53
      %59 = dma.hbm_to_vmem [thread:$0]  %s52, 1024, %s54, [#allocation6], 64, 64, 4
    $region17: #{tpu_custom_call.1} parent=1 // pred_fallthru
      _
    // Predicated region
    $region18: #{tpu_custom_call.1} parent=1 // pred_check
      _
    $region19: #{tpu_custom_call.1} parent=1 // pred_check_branch
      %61 = sbr.rel (0) target = $region21
    $region20: #{tpu_custom_call.1} parent=1 // pred_region
      _
    $region21: #{tpu_custom_call.1} parent=1 // pred_fallthru
      _
    // Predicated region
    $region22: #{tpu_custom_call.1} parent=1 // pred_check
      _
    $region23: #{tpu_custom_call.1} parent=1 // pred_check_branch
      %63 = sbr.rel (0) target = $region25
    $region24: #{tpu_custom_call.1} parent=1 // pred_region
      %65 = vsyncadd [#allocation9], 0
      %s66 = sshll.u32 %s5, 4
      %s67 = int_to_ptr.hbm [resolvable:$true] %s66
      %s68 = sshll.u32 [#allocation8], 4
      %s69 = int_to_ptr.vmem [resolvable:$true] %s68
      %74 = dma.hbm_to_vmem [thread:$0]  %s67, 1024, %s69, [#allocation9], 64, 64, 4
    $region25: #{tpu_custom_call.1} parent=1 // pred_fallthru
      _
    // Predicated region
    $region26: #{tpu_custom_call.1} parent=1 // pred_check
      _
    $region27: #{tpu_custom_call.1} parent=1 // pred_check_branch
      %76 = sbr.rel (0) target = $region29
    $region28: #{tpu_custom_call.1} parent=1 // pred_region
      _
    $region29: #{tpu_custom_call.1} parent=1 // pred_fallthru
      _
    // Predicated region
    $region30: #{tpu_custom_call.1} parent=1 // pred_check
      _
    $region31: #{tpu_custom_call.1} parent=1 // pred_check_branch
      %78 = sbr.rel (0) target = $region33
    $region32: #{tpu_custom_call.1} parent=1 // pred_region
      %80 = vsyncadd [#allocation9], 0
      %s81 = sshll.u32 %s7, 4
      %s82 = int_to_ptr.hbm [resolvable:$true] %s81
      %s83 = sshll.u32 [#allocation10], 4
      %s84 = int_to_ptr.vmem [resolvable:$true] %s83
      %89 = dma.hbm_to_vmem [thread:$0]  %s82, 1024, %s84, [#allocation9], 64, 64, 4
    $region33: #{tpu_custom_call.1} parent=1 // pred_fallthru
      _
    // Predicated region
    $region34: #{tpu_custom_call.1} parent=1 // pred_check
      _
    $region35: #{tpu_custom_call.1} parent=1 // pred_check_branch
      %91 = sbr.rel (0) target = $region37
    $region36: #{tpu_custom_call.1} parent=1 // pred_region
      _
    $region37: #{tpu_custom_call.1} parent=1 // pred_fallthru
      _
    // Predicated region
    $region38: #{tpu_custom_call.1} parent=1 // pred_check
      _
    $region39: #{tpu_custom_call.1} parent=1 // pred_check_branch
      %93 = sbr.rel (0) target = $region41
    $region40: #{tpu_custom_call.1} parent=1 // pred_region
      %95 = vsyncadd [#allocation12], 0
      %s96 = sshll.u32 %s9, 4
      %s97 = int_to_ptr.hbm [resolvable:$true] %s96
      %s98 = sshll.u32 [#allocation11], 4
      %s99 = int_to_ptr.vmem [resolvable:$true] %s98
      %104 = dma.hbm_to_vmem [thread:$0]  %s97, 1024, %s99, [#allocation12], 64, 64, 4
    $region41: #{tpu_custom_call.1} parent=1 // pred_fallthru
      _
    // Predicated region
    $region42: #{tpu_custom_call.1} parent=1 // pred_check
      _
    $region43: #{tpu_custom_call.1} parent=1 // pred_check_branch
      %106 = sbr.rel (0) target = $region45
    $region44: #{tpu_custom_call.1} parent=1 // pred_region
      _
    $region45: #{tpu_custom_call.1} parent=1 // pred_fallthru
      _
    // Predicated region
    $region46: #{tpu_custom_call.1} parent=1 // pred_check
      _
    $region47: #{tpu_custom_call.1} parent=1 // pred_check_branch
      %108 = sbr.rel (0) target = $region49
    $region48: #{tpu_custom_call.1} parent=1 // pred_region
      %110 = dma.done [#allocation3], 64
    $region49: #{tpu_custom_call.1} parent=1 // pred_fallthru
      _
    // Predicated region
    $region50: #{tpu_custom_call.1} parent=1 // pred_check
      _
    $region51: #{tpu_custom_call.1} parent=1 // pred_check_branch
      %112 = sbr.rel (0) target = $region53
    $region52: #{tpu_custom_call.1} parent=1 // pred_region
      %114 = dma.done [#allocation6], 1024
    $region53: #{tpu_custom_call.1} parent=1 // pred_fallthru
      _
    // Predicated region
    $region54: #{tpu_custom_call.1} parent=1 // pred_check
      _
    $region55: #{tpu_custom_call.1} parent=1 // pred_check_branch
      %116 = sbr.rel (0) target = $region57
    $region56: #{tpu_custom_call.1} parent=1 // pred_region
      %118 = dma.done [#allocation6], 1024
    $region57: #{tpu_custom_call.1} parent=1 // pred_fallthru
      _
    // Predicated region
    $region58: #{tpu_custom_call.1} parent=1 // pred_check
      _
    $region59: #{tpu_custom_call.1} parent=1 // pred_check_branch
      %120 = sbr.rel (0) target = $region61
    $region60: #{tpu_custom_call.1} parent=1 // pred_region
      %122 = dma.done [#allocation9], 1024
    $region61: #{tpu_custom_call.1} parent=1 // pred_fallthru
      _
    // Predicated region
    $region62: #{tpu_custom_call.1} parent=1 // pred_check
      _
    $region63: #{tpu_custom_call.1} parent=1 // pred_check_branch
      %124 = sbr.rel (0) target = $region65
    $region64: #{tpu_custom_call.1} parent=1 // pred_region
      %126 = dma.done [#allocation9], 1024
    $region65: #{tpu_custom_call.1} parent=1 // pred_fallthru
      _
    // Predicated region
    $region66: #{tpu_custom_call.1} parent=1 // pred_check
      _
    $region67: #{tpu_custom_call.1} parent=1 // pred_check_branch
      %128 = sbr.rel (0) target = $region69
    $region68: #{tpu_custom_call.1} parent=1 // pred_region
      %130 = dma.done [#allocation12], 1024
    $region69: #{tpu_custom_call.1} parent=1 // pred_fallthru
      _
    %v131 = vld [vmem:[#allocation2] sm:$0xf]
    %v132 = vunpack.c.l.bf16 %v131
    %v133 = vld [vmem:[#allocation5] sm:$0xf]
    %v134 = vld [vmem:[#allocation5 + $0x4] sm:$0xf]
    %v135 = vld [vmem:[#allocation5 + $0x8] sm:$0xf]
    %v136 = vld [vmem:[#allocation5 + $0xc] sm:$0xf]
    %v137 = vld [vmem:[#allocation5 + $0x10] sm:$0xf]
    %v138 = vld [vmem:[#allocation5 + $0x14] sm:$0xf]
    %v139 = vld [vmem:[#allocation5 + $0x18] sm:$0xf]
    %v140 = vld [vmem:[#allocation5 + $0x1c] sm:$0xf]
    %v141 = vld [vmem:[#allocation5 + $0x20] sm:$0xf]
    %v142 = vld [vmem:[#allocation5 + $0x24] sm:$0xf]
    %v143 = vld [vmem:[#allocation5 + $0x28] sm:$0xf]
    %v144 = vld [vmem:[#allocation5 + $0x2c] sm:$0xf]
    %v145 = vld [vmem:[#allocation5 + $0x30] sm:$0xf]
    %v146 = vld [vmem:[#allocation5 + $0x34] sm:$0xf]
    %v147 = vld [vmem:[#allocation5 + $0x38] sm:$0xf]
    %v148 = vld [vmem:[#allocation5 + $0x3c] sm:$0xf]
    %v149 = vld [vmem:[%s2] sm:$0x1]
    %v151 = vperm.slane %v149, 0
    %v169 = vunpack.c.l.b16 %v133
    %v170 = vunpack.c.l.b16 %v134
    %v171 = vunpack.c.l.b16 %v135
    %v172 = vunpack.c.l.b16 %v136
    %v173 = vunpack.c.l.b16 %v137
    %v174 = vunpack.c.l.b16 %v138
    %v175 = vunpack.c.l.b16 %v139
    %v176 = vunpack.c.l.b16 %v140
    %v177 = vunpack.c.l.b16 %v141
    %v178 = vunpack.c.l.b16 %v142
    %v179 = vunpack.c.l.b16 %v143
    %v180 = vunpack.c.l.b16 %v144
    %v181 = vunpack.c.l.b16 %v145
    %v182 = vunpack.c.l.b16 %v146
    %v183 = vunpack.c.l.b16 %v147
    %v184 = vunpack.c.l.b16 %v148
    %v185 = vpack.c.b16 %v170, %v169
    %v186 = vpack.c.b16 %v172, %v171
    %v187 = vpack.c.b16 %v174, %v173
    %v188 = vpack.c.b16 %v176, %v175
    %v189 = vpack.c.b16 %v178, %v177
    %v190 = vpack.c.b16 %v180, %v179
    %v191 = vpack.c.b16 %v182, %v181
    %v192 = vpack.c.b16 %v184, %v183
    %201 = vmatpush.bf16.msra.mxu0 %v192
    %202 = vmatpush.bf16.msra.mxu0 %v191
    %203 = vmatpush.bf16.msra.mxu0 %v190
    %204 = vmatpush.bf16.msra.mxu0 %v189
    %205 = vmatpush.bf16.msra.mxu0 %v188
    %206 = vmatpush.bf16.msra.mxu0 %v187
    %207 = vmatpush.bf16.msra.mxu0 %v186
    %208 = vmatpush.bf16.msra.mxu0 %v185
    %209 = vmatmul.bf16.gmra.mxu0 %v131
    %v210 = vpop.f32.mrf.mxu0
    %v211 = vadd.f32 %v151, %v210
    %v212 = vpop.f32.mrf.mxu0
    %213 = vdwg.mxu0
    %v214 = vmul.f32 %v211, 0.5
    %v215 = vmul.f32 %v211, 0.044715
    %v216 = vmul.f32 %v215, %v211
    %v217 = vmul.f32 %v216, %v211
    %v218 = vadd.f32 %v211, %v217
    %v219 = vmul.f32 %v218, 0.7978845
    %v220 = vtanh.pop %v219
    %v221 = vadd.f32 %v220, 1.0
    %v222 = vmul.f32 %v214, %v221
    %v223 = vadd.f32 %v132, %v222
    %v224 = vld [vmem:[#allocation7] sm:$0xf]
    %v225 = vld [vmem:[#allocation7 + $0x4] sm:$0xf]
    %v226 = vld [vmem:[#allocation7 + $0x8] sm:$0xf]
    %v227 = vld [vmem:[#allocation7 + $0xc] sm:$0xf]
    %v228 = vld [vmem:[#allocation7 + $0x10] sm:$0xf]
    %v229 = vld [vmem:[#allocation7 + $0x14] sm:$0xf]
    %v230 = vld [vmem:[#allocation7 + $0x18] sm:$0xf]
    %v231 = vld [vmem:[#allocation7 + $0x1c] sm:$0xf]
    %v232 = vld [vmem:[#allocation7 + $0x20] sm:$0xf]
    %v233 = vld [vmem:[#allocation7 + $0x24] sm:$0xf]
    %v234 = vld [vmem:[#allocation7 + $0x28] sm:$0xf]
    %v235 = vld [vmem:[#allocation7 + $0x2c] sm:$0xf]
    %v236 = vld [vmem:[#allocation7 + $0x30] sm:$0xf]
    %v237 = vld [vmem:[#allocation7 + $0x34] sm:$0xf]
    %v238 = vld [vmem:[#allocation7 + $0x38] sm:$0xf]
    %v239 = vld [vmem:[#allocation7 + $0x3c] sm:$0xf]
    %v240 = vld [vmem:[%s4] sm:$0x1]
    %v241 = vpack.c.bf16 %v223, %v223
    %v243 = vperm.slane %v240, 0
    %v261 = vunpack.c.l.b16 %v224
    %v262 = vunpack.c.l.b16 %v225
    %v263 = vunpack.c.l.b16 %v226
    %v264 = vunpack.c.l.b16 %v227
    %v265 = vunpack.c.l.b16 %v228
    %v266 = vunpack.c.l.b16 %v229
    %v267 = vunpack.c.l.b16 %v230
    %v268 = vunpack.c.l.b16 %v231
    %v269 = vunpack.c.l.b16 %v232
    %v270 = vunpack.c.l.b16 %v233
    %v271 = vunpack.c.l.b16 %v234
    %v272 = vunpack.c.l.b16 %v235
    %v273 = vunpack.c.l.b16 %v236
    %v274 = vunpack.c.l.b16 %v237
    %v275 = vunpack.c.l.b16 %v238
    %v276 = vunpack.c.l.b16 %v239
    %v277 = vpack.c.b16 %v262, %v261
    %v278 = vpack.c.b16 %v264, %v263
    %v279 = vpack.c.b16 %v266, %v265
    %v280 = vpack.c.b16 %v268, %v267
    %v281 = vpack.c.b16 %v270, %v269
    %v282 = vpack.c.b16 %v272, %v271
    %v283 = vpack.c.b16 %v274, %v273
    %v284 = vpack.c.b16 %v276, %v275
    %293 = vmatpush.bf16.msra.mxu0 %v284
    %294 = vmatpush.bf16.msra.mxu0 %v283
    %295 = vmatpush.bf16.msra.mxu0 %v282
    %296 = vmatpush.bf16.msra.mxu0 %v281
    %297 = vmatpush.bf16.msra.mxu0 %v280
    %298 = vmatpush.bf16.msra.mxu0 %v279
    %299 = vmatpush.bf16.msra.mxu0 %v278
    %300 = vmatpush.bf16.msra.mxu0 %v277
    %301 = vmatmul.bf16.gmra.mxu0 %v241
    %v302 = vpop.f32.mrf.mxu0
    %v303 = vadd.f32 %v243, %v302
    %v304 = vpop.f32.mrf.mxu0
    %305 = vdwg.mxu0
    %v306 = vmul.f32 %v303, 0.5
    %v307 = vmul.f32 %v303, 0.044715
    %v308 = vmul.f32 %v307, %v303
    %v309 = vmul.f32 %v308, %v303
    %v310 = vadd.f32 %v303, %v309
    %v311 = vmul.f32 %v310, 0.7978845
    %v312 = vtanh.pop %v311
    %v313 = vadd.f32 %v312, 1.0
    %v314 = vmul.f32 %v306, %v313
    %v315 = vadd.f32 %v223, %v314
    %v316 = vld [vmem:[#allocation8] sm:$0xf]
    %v317 = vld [vmem:[#allocation8 + $0x4] sm:$0xf]
    %v318 = vld [vmem:[#allocation8 + $0x8] sm:$0xf]
    %v319 = vld [vmem:[#allocation8 + $0xc] sm:$0xf]
    %v320 = vld [vmem:[#allocation8 + $0x10] sm:$0xf]
    %v321 = vld [vmem:[#allocation8 + $0x14] sm:$0xf]
    %v322 = vld [vmem:[#allocation8 + $0x18] sm:$0xf]
    %v323 = vld [vmem:[#allocation8 + $0x1c] sm:$0xf]
    %v324 = vld [vmem:[#allocation8 + $0x20] sm:$0xf]
    %v325 = vld [vmem:[#allocation8 + $0x24] sm:$0xf]
    %v326 = vld [vmem:[#allocation8 + $0x28] sm:$0xf]
    %v327 = vld [vmem:[#allocation8 + $0x2c] sm:$0xf]
    %v328 = vld [vmem:[#allocation8 + $0x30] sm:$0xf]
    %v329 = vld [vmem:[#allocation8 + $0x34] sm:$0xf]
    %v330 = vld [vmem:[#allocation8 + $0x38] sm:$0xf]
    %v331 = vld [vmem:[#allocation8 + $0x3c] sm:$0xf]
    %v332 = vld [vmem:[%s6] sm:$0x1]
    %v333 = vpack.c.bf16 %v315, %v315
    %v335 = vperm.slane %v332, 0
    %v353 = vunpack.c.l.b16 %v316
    %v354 = vunpack.c.l.b16 %v317
    %v355 = vunpack.c.l.b16 %v318
    %v356 = vunpack.c.l.b16 %v319
    %v357 = vunpack.c.l.b16 %v320
    %v358 = vunpack.c.l.b16 %v321
    %v359 = vunpack.c.l.b16 %v322
    %v360 = vunpack.c.l.b16 %v323
    %v361 = vunpack.c.l.b16 %v324
    %v362 = vunpack.c.l.b16 %v325
    %v363 = vunpack.c.l.b16 %v326
    %v364 = vunpack.c.l.b16 %v327
    %v365 = vunpack.c.l.b16 %v328
    %v366 = vunpack.c.l.b16 %v329
    %v367 = vunpack.c.l.b16 %v330
    %v368 = vunpack.c.l.b16 %v331
    %v369 = vpack.c.b16 %v354, %v353
    %v370 = vpack.c.b16 %v356, %v355
    %v371 = vpack.c.b16 %v358, %v357
    %v372 = vpack.c.b16 %v360, %v359
    %v373 = vpack.c.b16 %v362, %v361
    %v374 = vpack.c.b16 %v364, %v363
    %v375 = vpack.c.b16 %v366, %v365
    %v376 = vpack.c.b16 %v368, %v367
    %385 = vmatpush.bf16.msra.mxu0 %v376
    %386 = vmatpush.bf16.msra.mxu0 %v375
    %387 = vmatpush.bf16.msra.mxu0 %v374
    %388 = vmatpush.bf16.msra.mxu0 %v373
    %389 = vmatpush.bf16.msra.mxu0 %v372
    %390 = vmatpush.bf16.msra.mxu0 %v371
    %391 = vmatpush.bf16.msra.mxu0 %v370
    %392 = vmatpush.bf16.msra.mxu0 %v369
    %393 = vmatmul.bf16.gmra.mxu0 %v333
    %v394 = vpop.f32.mrf.mxu0
    %v395 = vadd.f32 %v335, %v394
    %v396 = vpop.f32.mrf.mxu0
    %397 = vdwg.mxu0
    %v398 = vmul.f32 %v395, 0.5
    %v399 = vmul.f32 %v395, 0.044715
    %v400 = vmul.f32 %v399, %v395
    %v401 = vmul.f32 %v400, %v395
    %v402 = vadd.f32 %v395, %v401
    %v403 = vmul.f32 %v402, 0.7978845
    %v404 = vtanh.pop %v403
    %v405 = vadd.f32 %v404, 1.0
    %v406 = vmul.f32 %v398, %v405
    %v407 = vadd.f32 %v315, %v406
    %v408 = vld [vmem:[#allocation10] sm:$0xf]
    %v409 = vld [vmem:[#allocation10 + $0x4] sm:$0xf]
    %v410 = vld [vmem:[#allocation10 + $0x8] sm:$0xf]
    %v411 = vld [vmem:[#allocation10 + $0xc] sm:$0xf]
    %v412 = vld [vmem:[#allocation10 + $0x10] sm:$0xf]
    %v413 = vld [vmem:[#allocation10 + $0x14] sm:$0xf]
    %v414 = vld [vmem:[#allocation10 + $0x18] sm:$0xf]
    %v415 = vld [vmem:[#allocation10 + $0x1c] sm:$0xf]
    %v416 = vld [vmem:[#allocation10 + $0x20] sm:$0xf]
    %v417 = vld [vmem:[#allocation10 + $0x24] sm:$0xf]
    %v418 = vld [vmem:[#allocation10 + $0x28] sm:$0xf]
    %v419 = vld [vmem:[#allocation10 + $0x2c] sm:$0xf]
    %v420 = vld [vmem:[#allocation10 + $0x30] sm:$0xf]
    %v421 = vld [vmem:[#allocation10 + $0x34] sm:$0xf]
    %v422 = vld [vmem:[#allocation10 + $0x38] sm:$0xf]
    %v423 = vld [vmem:[#allocation10 + $0x3c] sm:$0xf]
    %v424 = vld [vmem:[%s8] sm:$0x1]
    %v425 = vpack.c.bf16 %v407, %v407
    %v427 = vperm.slane %v424, 0
    %v445 = vunpack.c.l.b16 %v408
    %v446 = vunpack.c.l.b16 %v409
    %v447 = vunpack.c.l.b16 %v410
    %v448 = vunpack.c.l.b16 %v411
    %v449 = vunpack.c.l.b16 %v412
    %v450 = vunpack.c.l.b16 %v413
    %v451 = vunpack.c.l.b16 %v414
    %v452 = vunpack.c.l.b16 %v415
    %v453 = vunpack.c.l.b16 %v416
    %v454 = vunpack.c.l.b16 %v417
    %v455 = vunpack.c.l.b16 %v418
    %v456 = vunpack.c.l.b16 %v419
    %v457 = vunpack.c.l.b16 %v420
    %v458 = vunpack.c.l.b16 %v421
    %v459 = vunpack.c.l.b16 %v422
    %v460 = vunpack.c.l.b16 %v423
    %v461 = vpack.c.b16 %v446, %v445
    %v462 = vpack.c.b16 %v448, %v447
    %v463 = vpack.c.b16 %v450, %v449
    %v464 = vpack.c.b16 %v452, %v451
    %v465 = vpack.c.b16 %v454, %v453
    %v466 = vpack.c.b16 %v456, %v455
    %v467 = vpack.c.b16 %v458, %v457
    %v468 = vpack.c.b16 %v460, %v459
    %477 = vmatpush.bf16.msra.mxu0 %v468
    %478 = vmatpush.bf16.msra.mxu0 %v467
    %479 = vmatpush.bf16.msra.mxu0 %v466
    %480 = vmatpush.bf16.msra.mxu0 %v465
    %481 = vmatpush.bf16.msra.mxu0 %v464
    %482 = vmatpush.bf16.msra.mxu0 %v463
    %483 = vmatpush.bf16.msra.mxu0 %v462
    %484 = vmatpush.bf16.msra.mxu0 %v461
    %485 = vmatmul.bf16.gmra.mxu0 %v425
    %v486 = vpop.f32.mrf.mxu0
    %v487 = vadd.f32 %v427, %v486
    %v488 = vpop.f32.mrf.mxu0
    %489 = vdwg.mxu0
    %v490 = vmul.f32 %v487, 0.5
    %v491 = vmul.f32 %v487, 0.044715
    %v492 = vmul.f32 %v491, %v487
    %v493 = vmul.f32 %v492, %v487
    %v494 = vadd.f32 %v487, %v493
    %v495 = vmul.f32 %v494, 0.7978845
    %v496 = vtanh.pop %v495
    %v497 = vadd.f32 %v496, 1.0
    %v498 = vmul.f32 %v490, %v497
    %v499 = vadd.f32 %v407, %v498
    %v500 = vld [vmem:[#allocation11] sm:$0xf]
    %v501 = vld [vmem:[#allocation11 + $0x4] sm:$0xf]
    %v502 = vld [vmem:[#allocation11 + $0x8] sm:$0xf]
    %v503 = vld [vmem:[#allocation11 + $0xc] sm:$0xf]
    %v504 = vld [vmem:[#allocation11 + $0x10] sm:$0xf]
    %v505 = vld [vmem:[#allocation11 + $0x14] sm:$0xf]
    %v506 = vld [vmem:[#allocation11 + $0x18] sm:$0xf]
    %v507 = vld [vmem:[#allocation11 + $0x1c] sm:$0xf]
    %v508 = vld [vmem:[#allocation11 + $0x20] sm:$0xf]
    %v509 = vld [vmem:[#allocation11 + $0x24] sm:$0xf]
    %v510 = vld [vmem:[#allocation11 + $0x28] sm:$0xf]
    %v511 = vld [vmem:[#allocation11 + $0x2c] sm:$0xf]
    %v512 = vld [vmem:[#allocation11 + $0x30] sm:$0xf]
    %v513 = vld [vmem:[#allocation11 + $0x34] sm:$0xf]
    %v514 = vld [vmem:[#allocation11 + $0x38] sm:$0xf]
    %v515 = vld [vmem:[#allocation11 + $0x3c] sm:$0xf]
    %v516 = vld [vmem:[%s10] sm:$0x1]
    %v517 = vpack.c.bf16 %v499, %v499
    %v519 = vperm.slane %v516, 0
    %v537 = vunpack.c.l.b16 %v500
    %v538 = vunpack.c.l.b16 %v501
    %v539 = vunpack.c.l.b16 %v502
    %v540 = vunpack.c.l.b16 %v503
    %v541 = vunpack.c.l.b16 %v504
    %v542 = vunpack.c.l.b16 %v505
    %v543 = vunpack.c.l.b16 %v506
    %v544 = vunpack.c.l.b16 %v507
    %v545 = vunpack.c.l.b16 %v508
    %v546 = vunpack.c.l.b16 %v509
    %v547 = vunpack.c.l.b16 %v510
    %v548 = vunpack.c.l.b16 %v511
    %v549 = vunpack.c.l.b16 %v512
    %v550 = vunpack.c.l.b16 %v513
    %v551 = vunpack.c.l.b16 %v514
    %v552 = vunpack.c.l.b16 %v515
    %v553 = vpack.c.b16 %v538, %v537
    %v554 = vpack.c.b16 %v540, %v539
    %v555 = vpack.c.b16 %v542, %v541
    %v556 = vpack.c.b16 %v544, %v543
    %v557 = vpack.c.b16 %v546, %v545
    %v558 = vpack.c.b16 %v548, %v547
    %v559 = vpack.c.b16 %v550, %v549
    %v560 = vpack.c.b16 %v552, %v551
    %569 = vmatpush.bf16.msra.mxu0 %v560
    %570 = vmatpush.bf16.msra.mxu0 %v559
    %571 = vmatpush.bf16.msra.mxu0 %v558
    %572 = vmatpush.bf16.msra.mxu0 %v557
    %573 = vmatpush.bf16.msra.mxu0 %v556
    %574 = vmatpush.bf16.msra.mxu0 %v555
    %575 = vmatpush.bf16.msra.mxu0 %v554
    %576 = vmatpush.bf16.msra.mxu0 %v553
    %577 = vmatmul.bf16.gmra.mxu0 %v517
    %v578 = vpop.f32.mrf.mxu0
    %v579 = vadd.f32 %v519, %v578
    %v580 = vpop.f32.mrf.mxu0
    %581 = vdwg.mxu0
    %v582 = vmul.f32 %v579, 0.5
    %v583 = vmul.f32 %v579, 0.044715
    %v584 = vmul.f32 %v583, %v579
    %v585 = vmul.f32 %v584, %v579
    %v586 = vadd.f32 %v579, %v585
    %v587 = vmul.f32 %v586, 0.7978845
    %v588 = vtanh.pop %v587
    %v589 = vadd.f32 %v588, 1.0
    %v590 = vmul.f32 %v582, %v589
    %591 = vst [vmem:[#allocation13] sm:$0xff] %v590
    // Predicated region
    $region70: #{tpu_custom_call.1} parent=1 // pred_check
      _
    $region71: #{tpu_custom_call.1} parent=1 // pred_check_branch
      %593 = sbr.rel (0) target = $region73
    $region72: #{tpu_custom_call.1} parent=1 // pred_region
      %595 = vsyncadd [#allocation4], 0
      %s597 = sshll.u32 [#allocation13], 4
      %s598 = int_to_ptr.vmem [resolvable:$true] %s597
      %s599 = sshll.u32 %s11, 4
      %s600 = int_to_ptr.hbm [resolvable:$true] %s599
      %602 = dma.vmem_to_hbm [thread:$0]  %s598, 128, %s600, [#allocation4]
    $region73: #{tpu_custom_call.1} parent=1 // pred_fallthru
      _
    // Predicated region
    $region74: #{tpu_custom_call.1} parent=1 // pred_check
      _
    $region75: #{tpu_custom_call.1} parent=1 // pred_check_branch
      %604 = sbr.rel (0) target = $region77
    $region76: #{tpu_custom_call.1} parent=1 // pred_region
      %606 = dma.done [#allocation4], 128
    $region77: #{tpu_custom_call.1} parent=1 // pred_fallthru
      _
    %607 = vsyncpa [#allocation3], 1
    %608 = vsyncpa [#allocation6], 1
    %609 = vsyncpa [#allocation9], 1
    %610 = vsyncpa [#allocation12], 1
    %611 = vsyncpa [#allocation4], 1

// kernel: tpu_custom_call.1
$region0: #{tpu_custom_call.1}
  #allocation0 [shape = 'u32[]', space=smem, size = 0x4, offset = 0x4, fixed_abs, tag = 'smem constant byte address 0x4 - core index']
  #allocation1 [shape = 'u32[72,128]{1,0:T(1,128)}', space=vmem, size = 0x9000, scoped, tag = 'internal scratch']
  %s0 = inlined_call_operand.hbm [shape: bf16[8,128], index: 0, kind: input, shape index: {}]
  %s1 = inlined_call_operand.hbm [shape: bf16[128,128], index: 1, kind: input, shape index: {}]
  %s2 = inlined_call_operand.vmem [shape: f32[1,128], index: 2, kind: input, shape index: {}]
  %s3 = inlined_call_operand.hbm [shape: bf16[128,128], index: 3, kind: input, shape index: {}]
  %s4 = inlined_call_operand.vmem [shape: f32[1,128], index: 4, kind: input, shape index: {}]
  %s5 = inlined_call_operand.hbm [shape: bf16[128,128], index: 5, kind: input, shape index: {}]
  %s6 = inlined_call_operand.vmem [shape: f32[1,128], index: 6, kind: input, shape index: {}]
  %s7 = inlined_call_operand.hbm [shape: bf16[128,128], index: 7, kind: input, shape index: {}]
  %s8 = inlined_call_operand.vmem [shape: f32[1,128], index: 8, kind: input, shape index: {}]
  %s9 = inlined_call_operand.hbm [shape: bf16[128,128], index: 9, kind: input, shape index: {}]
  %s10 = inlined_call_operand.vmem [shape: f32[1,128], index: 10, kind: input, shape index: {}]
  %s11 = inlined_call_operand.hbm [shape: f32[8,128], index: 11, kind: output, shape index: {}]
  %s12 = sld [smem:[#allocation0]]
  $region78: #{tpu_custom_call.1} parent=0
    _
  %s14 = ssub.s32 1, %s12
  %s15 = scalar_select 0, %s14, %s12
  $region1: #{tpu_custom_call.1} parent=0
    #allocation2 [shape = 'u8[2048]{0}', space=vmem, size = 0x800, scoped, tag = 'input window, operand 0, single buffered']
    #allocation3 [shape = 's32[1]{0}', space=sflag, size = 0x4, scoped, tag = 'scoped memory for tpu_custom_call.1']
    #allocation4 [shape = 's32[1]{0}', space=sflag, size = 0x4, scoped, tag = 'scoped memory for tpu_custom_call.1']
    #allocation5 [shape = 'u8[32768]{0}', space=vmem, size = 0x8000, scoped, tag = 'input window, operand 1, single buffered']
    #allocation6 [shape = 's32[1]{0}', space=sflag, size = 0x4, scoped, tag = 'scoped memory for tpu_custom_call.1']
    #allocation7 [shape = 'u8[32768]{0}', space=vmem, size = 0x8000, scoped, tag = 'input window, operand 3, single buffered']
    #allocation8 [shape = 'u8[32768]{0}', space=vmem, size = 0x8000, scoped, tag = 'input window, operand 5, single buffered']
    #allocation9 [shape = 's32[1]{0}', space=sflag, size = 0x4, scoped, tag = 'scoped memory for tpu_custom_call.1']
    #allocation10 [shape = 'u8[32768]{0}', space=vmem, size = 0x8000, scoped, tag = 'input window, operand 7, single buffered']
    #allocation11 [shape = 'u8[32768]{0}', space=vmem, size = 0x8000, scoped, tag = 'input window, operand 9, single buffered']
    #allocation12 [shape = 's32[1]{0}', space=sflag, size = 0x4, scoped, tag = 'scoped memory for tpu_custom_call.1']
    #allocation13 [shape = 'u8[4096]{0}', space=vmem, size = 0x1000, scoped, tag = 'output window, operand 0, single buffered']
    %16 = vsyncpa [#allocation3], 0
    %17 = vsyncpa [#allocation6], 0
    %18 = vsyncpa [#allocation9], 0
    %19 = vsyncpa [#allocation12], 0
    %20 = vsyncpa [#allocation4], 0
    // Predicated region
    $region2: #{tpu_custom_call.1} parent=1 // pred_check
      _
    $region3: #{tpu_custom_call.1} parent=1 // pred_check_branch
      %22 = sbr.rel (0) target = $region5
    $region4: #{tpu_custom_call.1} parent=1 // pred_region
      %24 = vsyncadd [#allocation3], 0
      %s26 = sshll.u32 %s0, 4
      %s27 = int_to_ptr.hbm [resolvable:$true] %s26
      %s28 = sshll.u32 [#allocation2], 4
      %s29 = int_to_ptr.vmem [resolvable:$true] %s28
      %31 = dma.hbm_to_vmem [thread:$0]  %s27, 64, %s29, [#allocation3]
    $region5: #{tpu_custom_call.1} parent=1 // pred_fallthru
      _
    // Predicated region
    $region6: #{tpu_custom_call.1} parent=1 // pred_check
      _
    $region7: #{tpu_custom_call.1} parent=1 // pred_check_branch
      %33 = sbr.rel (0) target = $region9
    $region8: #{tpu_custom_call.1} parent=1 // pred_region
      %35 = vsyncadd [#allocation6], 0
      %s36 = sshll.u32 %s1, 4
      %s37 = int_to_ptr.hbm [resolvable:$true] %s36
      %s38 = sshll.u32 [#allocation5], 4
      %s39 = int_to_ptr.vmem [resolvable:$true] %s38
      %44 = dma.hbm_to_vmem [thread:$0]  %s37, 1024, %s39, [#allocation6], 64, 64, 4
    $region9: #{tpu_custom_call.1} parent=1 // pred_fallthru
      _
    // Predicated region
    $region10: #{tpu_custom_call.1} parent=1 // pred_check
      _
    $region11: #{tpu_custom_call.1} parent=1 // pred_check_branch
      %46 = sbr.rel (0) target = $region13
    $region12: #{tpu_custom_call.1} parent=1 // pred_region
      _
    $region13: #{tpu_custom_call.1} parent=1 // pred_fallthru
      _
    // Predicated region
    $region14: #{tpu_custom_call.1} parent=1 // pred_check
      _
    $region15: #{tpu_custom_call.1} parent=1 // pred_check_branch
      %48 = sbr.rel (0) target = $region17
    $region16: #{tpu_custom_call.1} parent=1 // pred_region
      %50 = vsyncadd [#allocation6], 0
      %s51 = sshll.u32 %s3, 4
      %s52 = int_to_ptr.hbm [resolvable:$true] %s51
      %s53 = sshll.u32 [#allocation7], 4
      %s54 = int_to_ptr.vmem [resolvable:$true] %s53
      %59 = dma.hbm_to_vmem [thread:$0]  %s52, 1024, %s54, [#allocation6], 64, 64, 4
    $region17: #{tpu_custom_call.1} parent=1 // pred_fallthru
      _
    // Predicated region
    $region18: #{tpu_custom_call.1} parent=1 // pred_check
      _
    $region19: #{tpu_custom_call.1} parent=1 // pred_check_branch
      %61 = sbr.rel (0) target = $region21
    $region20: #{tpu_custom_call.1} parent=1 // pred_region
      _
    $region21: #{tpu_custom_call.1} parent=1 // pred_fallthru
      _
    // Predicated region
    $region22: #{tpu_custom_call.1} parent=1 // pred_check
      _
    $region23: #{tpu_custom_call.1} parent=1 // pred_check_branch
      %63 = sbr.rel (0) target = $region25
    $region24: #{tpu_custom_call.1} parent=1 // pred_region
      %65 = vsyncadd [#allocation9], 0
      %s66 = sshll.u32 %s5, 4
      %s67 = int_to_ptr.hbm [resolvable:$true] %s66
      %s68 = sshll.u32 [#allocation8], 4
      %s69 = int_to_ptr.vmem [resolvable:$true] %s68
      %74 = dma.hbm_to_vmem [thread:$0]  %s67, 1024, %s69, [#allocation9], 64, 64, 4
    $region25: #{tpu_custom_call.1} parent=1 // pred_fallthru
      _
    // Predicated region
    $region26: #{tpu_custom_call.1} parent=1 // pred_check
      _
    $region27: #{tpu_custom_call.1} parent=1 // pred_check_branch
      %76 = sbr.rel (0) target = $region29
    $region28: #{tpu_custom_call.1} parent=1 // pred_region
      _
    $region29: #{tpu_custom_call.1} parent=1 // pred_fallthru
      _
    // Predicated region
    $region30: #{tpu_custom_call.1} parent=1 // pred_check
      _
    $region31: #{tpu_custom_call.1} parent=1 // pred_check_branch
      %78 = sbr.rel (0) target = $region33
    $region32: #{tpu_custom_call.1} parent=1 // pred_region
      %80 = vsyncadd [#allocation9], 0
      %s81 = sshll.u32 %s7, 4
      %s82 = int_to_ptr.hbm [resolvable:$true] %s81
      %s83 = sshll.u32 [#allocation10], 4
      %s84 = int_to_ptr.vmem [resolvable:$true] %s83
      %89 = dma.hbm_to_vmem [thread:$0]  %s82, 1024, %s84, [#allocation9], 64, 64, 4
    $region33: #{tpu_custom_call.1} parent=1 // pred_fallthru
      _
    // Predicated region
    $region34: #{tpu_custom_call.1} parent=1 // pred_check
      _
    $region35: #{tpu_custom_call.1} parent=1 // pred_check_branch
      %91 = sbr.rel (0) target = $region37
    $region36: #{tpu_custom_call.1} parent=1 // pred_region
      _
    $region37: #{tpu_custom_call.1} parent=1 // pred_fallthru
      _
    // Predicated region
    $region38: #{tpu_custom_call.1} parent=1 // pred_check
      _
    $region39: #{tpu_custom_call.1} parent=1 // pred_check_branch
      %93 = sbr.rel (0) target = $region41
    $region40: #{tpu_custom_call.1} parent=1 // pred_region
      %95 = vsyncadd [#allocation12], 0
      %s96 = sshll.u32 %s9, 4
      %s97 = int_to_ptr.hbm [resolvable:$true] %s96
      %s98 = sshll.u32 [#allocation11], 4
      %s99 = int_to_ptr.vmem [resolvable:$true] %s98
      %104 = dma.hbm_to_vmem [thread:$0]  %s97, 1024, %s99, [#allocation12], 64, 64, 4
    $region41: #{tpu_custom_call.1} parent=1 // pred_fallthru
      _
    // Predicated region
    $region42: #{tpu_custom_call.1} parent=1 // pred_check
      _
    $region43: #{tpu_custom_call.1} parent=1 // pred_check_branch
      %106 = sbr.rel (0) target = $region45
    $region44: #{tpu_custom_call.1} parent=1 // pred_region
      _
    $region45: #{tpu_custom_call.1} parent=1 // pred_fallthru
      _
    // Predicated region
    $region46: #{tpu_custom_call.1} parent=1 // pred_check
      _
    $region47: #{tpu_custom_call.1} parent=1 // pred_check_branch
      %108 = sbr.rel (0) target = $region49
    $region48: #{tpu_custom_call.1} parent=1 // pred_region
      %110 = dma.done [#allocation3], 64
    $region49: #{tpu_custom_call.1} parent=1 // pred_fallthru
      _
    // Predicated region
    $region50: #{tpu_custom_call.1} parent=1 // pred_check
      _
    $region51: #{tpu_custom_call.1} parent=1 // pred_check_branch
      %112 = sbr.rel (0) target = $region53
    $region52: #{tpu_custom_call.1} parent=1 // pred_region
      %114 = dma.done [#allocation6], 1024
    $region53: #{tpu_custom_call.1} parent=1 // pred_fallthru
      _
    // Predicated region
    $region54: #{tpu_custom_call.1} parent=1 // pred_check
      _
    $region55: #{tpu_custom_call.1} parent=1 // pred_check_branch
      %116 = sbr.rel (0) target = $region57
    $region56: #{tpu_custom_call.1} parent=1 // pred_region
      %118 = dma.done [#allocation6], 1024
    $region57: #{tpu_custom_call.1} parent=1 // pred_fallthru
      _
    // Predicated region
    $region58: #{tpu_custom_call.1} parent=1 // pred_check
      _
    $region59: #{tpu_custom_call.1} parent=1 // pred_check_branch
      %120 = sbr.rel (0) target = $region61
    $region60: #{tpu_custom_call.1} parent=1 // pred_region
      %122 = dma.done [#allocation9], 1024
    $region61: #{tpu_custom_call.1} parent=1 // pred_fallthru
      _
    // Predicated region
    $region62: #{tpu_custom_call.1} parent=1 // pred_check
      _
    $region63: #{tpu_custom_call.1} parent=1 // pred_check_branch
      %124 = sbr.rel (0) target = $region65
    $region64: #{tpu_custom_call.1} parent=1 // pred_region
      %126 = dma.done [#allocation9], 1024
    $region65: #{tpu_custom_call.1} parent=1 // pred_fallthru
      _
    // Predicated region
    $region66: #{tpu_custom_call.1} parent=1 // pred_check
      _
    $region67: #{tpu_custom_call.1} parent=1 // pred_check_branch
      %128 = sbr.rel (0) target = $region69
    $region68: #{tpu_custom_call.1} parent=1 // pred_region
      %130 = dma.done [#allocation12], 1024
    $region69: #{tpu_custom_call.1} parent=1 // pred_fallthru
      _
    %v131 = vld [vmem:[#allocation2] sm:$0xf]
    %v132 = vunpack.c.l.bf16 %v131
    %v133 = vld [vmem:[#allocation5] sm:$0xf]
    %v134 = vld [vmem:[#allocation5 + $0x4] sm:$0xf]
    %v135 = vld [vmem:[#allocation5 + $0x8] sm:$0xf]
    %v136 = vld [vmem:[#allocation5 + $0xc] sm:$0xf]
    %v137 = vld [vmem:[#allocation5 + $0x10] sm:$0xf]
    %v138 = vld [vmem:[#allocation5 + $0x14] sm:$0xf]
    %v139 = vld [vmem:[#allocation5 + $0x18] sm:$0xf]
    %v140 = vld [vmem:[#allocation5 + $0x1c] sm:$0xf]
    %v141 = vld [vmem:[#allocation5 + $0x20] sm:$0xf]
    %v142 = vld [vmem:[#allocation5 + $0x24] sm:$0xf]
    %v143 = vld [vmem:[#allocation5 + $0x28] sm:$0xf]
    %v144 = vld [vmem:[#allocation5 + $0x2c] sm:$0xf]
    %v145 = vld [vmem:[#allocation5 + $0x30] sm:$0xf]
    %v146 = vld [vmem:[#allocation5 + $0x34] sm:$0xf]
    %v147 = vld [vmem:[#allocation5 + $0x38] sm:$0xf]
    %v148 = vld [vmem:[#allocation5 + $0x3c] sm:$0xf]
    %v149 = vld [vmem:[%s2] sm:$0x1]
    %v151 = vperm.slane %v149, 0
    %v169 = vunpack.c.l.b16 %v133
    %v170 = vunpack.c.l.b16 %v134
    %v171 = vunpack.c.l.b16 %v135
    %v172 = vunpack.c.l.b16 %v136
    %v173 = vunpack.c.l.b16 %v137
    %v174 = vunpack.c.l.b16 %v138
    %v175 = vunpack.c.l.b16 %v139
    %v176 = vunpack.c.l.b16 %v140
    %v177 = vunpack.c.l.b16 %v141
    %v178 = vunpack.c.l.b16 %v142
    %v179 = vunpack.c.l.b16 %v143
    %v180 = vunpack.c.l.b16 %v144
    %v181 = vunpack.c.l.b16 %v145
    %v182 = vunpack.c.l.b16 %v146
    %v183 = vunpack.c.l.b16 %v147
    %v184 = vunpack.c.l.b16 %v148
    %v185 = vpack.c.b16 %v170, %v169
    %v186 = vpack.c.b16 %v172, %v171
    %v187 = vpack.c.b16 %v174, %v173
    %v188 = vpack.c.b16 %v176, %v175
    %v189 = vpack.c.b16 %v178, %v177
    %v190 = vpack.c.b16 %v180, %v179
    %v191 = vpack.c.b16 %v182, %v181
    %v192 = vpack.c.b16 %v184, %v183
    %201 = vmatpush.bf16.msra.mxu0 %v192
    %202 = vmatpush.bf16.msra.mxu0 %v191
    %203 = vmatpush.bf16.msra.mxu0 %v190
    %204 = vmatpush.bf16.msra.mxu0 %v189
    %205 = vmatpush.bf16.msra.mxu0 %v188
    %206 = vmatpush.bf16.msra.mxu0 %v187
    %207 = vmatpush.bf16.msra.mxu0 %v186
    %208 = vmatpush.bf16.msra.mxu0 %v185
    %209 = vmatmul.bf16.gmra.mxu0 %v131
    %v210 = vpop.f32.mrf.mxu0
    %v211 = vadd.f32 %v151, %v210
    %v212 = vpop.f32.mrf.mxu0
    %213 = vdwg.mxu0
    %v214 = vmul.f32 %v211, 0.5
    %v215 = vmul.f32 %v211, 0.044715
    %v216 = vmul.f32 %v215, %v211
    %v217 = vmul.f32 %v216, %v211
    %v218 = vadd.f32 %v211, %v217
    %v219 = vmul.f32 %v218, 0.7978845
    %v220 = vtanh.pop %v219
    %v221 = vadd.f32 %v220, 1.0
    %v222 = vmul.f32 %v214, %v221
    %v223 = vadd.f32 %v132, %v222
    %v224 = vld [vmem:[#allocation7] sm:$0xf]
    %v225 = vld [vmem:[#allocation7 + $0x4] sm:$0xf]
    %v226 = vld [vmem:[#allocation7 + $0x8] sm:$0xf]
    %v227 = vld [vmem:[#allocation7 + $0xc] sm:$0xf]
    %v228 = vld [vmem:[#allocation7 + $0x10] sm:$0xf]
    %v229 = vld [vmem:[#allocation7 + $0x14] sm:$0xf]
    %v230 = vld [vmem:[#allocation7 + $0x18] sm:$0xf]
    %v231 = vld [vmem:[#allocation7 + $0x1c] sm:$0xf]
    %v232 = vld [vmem:[#allocation7 + $0x20] sm:$0xf]
    %v233 = vld [vmem:[#allocation7 + $0x24] sm:$0xf]
    %v234 = vld [vmem:[#allocation7 + $0x28] sm:$0xf]
    %v235 = vld [vmem:[#allocation7 + $0x2c] sm:$0xf]
    %v236 = vld [vmem:[#allocation7 + $0x30] sm:$0xf]
    %v237 = vld [vmem:[#allocation7 + $0x34] sm:$0xf]
    %v238 = vld [vmem:[#allocation7 + $0x38] sm:$0xf]
    %v239 = vld [vmem:[#allocation7 + $0x3c] sm:$0xf]
    %v240 = vld [vmem:[%s4] sm:$0x1]
    %v241 = vpack.c.bf16 %v223, %v223
    %v243 = vperm.slane %v240, 0
    %v261 = vunpack.c.l.b16 %v224
    %v262 = vunpack.c.l.b16 %v225
    %v263 = vunpack.c.l.b16 %v226
    %v264 = vunpack.c.l.b16 %v227
    %v265 = vunpack.c.l.b16 %v228
    %v266 = vunpack.c.l.b16 %v229
    %v267 = vunpack.c.l.b16 %v230
    %v268 = vunpack.c.l.b16 %v231
    %v269 = vunpack.c.l.b16 %v232
    %v270 = vunpack.c.l.b16 %v233
    %v271 = vunpack.c.l.b16 %v234
    %v272 = vunpack.c.l.b16 %v235
    %v273 = vunpack.c.l.b16 %v236
    %v274 = vunpack.c.l.b16 %v237
    %v275 = vunpack.c.l.b16 %v238
    %v276 = vunpack.c.l.b16 %v239
    %v277 = vpack.c.b16 %v262, %v261
    %v278 = vpack.c.b16 %v264, %v263
    %v279 = vpack.c.b16 %v266, %v265
    %v280 = vpack.c.b16 %v268, %v267
    %v281 = vpack.c.b16 %v270, %v269
    %v282 = vpack.c.b16 %v272, %v271
    %v283 = vpack.c.b16 %v274, %v273
    %v284 = vpack.c.b16 %v276, %v275
    %293 = vmatpush.bf16.msra.mxu0 %v284
    %294 = vmatpush.bf16.msra.mxu0 %v283
    %295 = vmatpush.bf16.msra.mxu0 %v282
    %296 = vmatpush.bf16.msra.mxu0 %v281
    %297 = vmatpush.bf16.msra.mxu0 %v280
    %298 = vmatpush.bf16.msra.mxu0 %v279
    %299 = vmatpush.bf16.msra.mxu0 %v278
    %300 = vmatpush.bf16.msra.mxu0 %v277
    %301 = vmatmul.bf16.gmra.mxu0 %v241
    %v302 = vpop.f32.mrf.mxu0
    %v303 = vadd.f32 %v243, %v302
    %v304 = vpop.f32.mrf.mxu0
    %305 = vdwg.mxu0
    %v306 = vmul.f32 %v303, 0.5
    %v307 = vmul.f32 %v303, 0.044715
    %v308 = vmul.f32 %v307, %v303
    %v309 = vmul.f32 %v308, %v303
    %v310 = vadd.f32 %v303, %v309
    %v311 = vmul.f32 %v310, 0.7978845
    %v312 = vtanh.pop %v311
    %v313 = vadd.f32 %v312, 1.0
    %v314 = vmul.f32 %v306, %v313
    %v315 = vadd.f32 %v223, %v314
    %v316 = vld [vmem:[#allocation8] sm:$0xf]
    %v317 = vld [vmem:[#allocation8 + $0x4] sm:$0xf]
    %v318 = vld [vmem:[#allocation8 + $0x8] sm:$0xf]
    %v319 = vld [vmem:[#allocation8 + $0xc] sm:$0xf]
    %v320 = vld [vmem:[#allocation8 + $0x10] sm:$0xf]
    %v321 = vld [vmem:[#allocation8 + $0x14] sm:$0xf]
    %v322 = vld [vmem:[#allocation8 + $0x18] sm:$0xf]
    %v323 = vld [vmem:[#allocation8 + $0x1c] sm:$0xf]
    %v324 = vld [vmem:[#allocation8 + $0x20] sm:$0xf]
    %v325 = vld [vmem:[#allocation8 + $0x24] sm:$0xf]
    %v326 = vld [vmem:[#allocation8 + $0x28] sm:$0xf]
    %v327 = vld [vmem:[#allocation8 + $0x2c] sm:$0xf]
    %v328 = vld [vmem:[#allocation8 + $0x30] sm:$0xf]
    %v329 = vld [vmem:[#allocation8 + $0x34] sm:$0xf]
    %v330 = vld [vmem:[#allocation8 + $0x38] sm:$0xf]
    %v331 = vld [vmem:[#allocation8 + $0x3c] sm:$0xf]
    %v332 = vld [vmem:[%s6] sm:$0x1]
    %v333 = vpack.c.bf16 %v315, %v315
    %v335 = vperm.slane %v332, 0
    %v353 = vunpack.c.l.b16 %v316
    %v354 = vunpack.c.l.b16 %v317
    %v355 = vunpack.c.l.b16 %v318
    %v356 = vunpack.c.l.b16 %v319
    %v357 = vunpack.c.l.b16 %v320
    %v358 = vunpack.c.l.b16 %v321
    %v359 = vunpack.c.l.b16 %v322
    %v360 = vunpack.c.l.b16 %v323
    %v361 = vunpack.c.l.b16 %v324
    %v362 = vunpack.c.l.b16 %v325
    %v363 = vunpack.c.l.b16 %v326
    %v364 = vunpack.c.l.b16 %v327
    %v365 = vunpack.c.l.b16 %v328
    %v366 = vunpack.c.l.b16 %v329
    %v367 = vunpack.c.l.b16 %v330
    %v368 = vunpack.c.l.b16 %v331
    %v369 = vpack.c.b16 %v354, %v353
    %v370 = vpack.c.b16 %v356, %v355
    %v371 = vpack.c.b16 %v358, %v357
    %v372 = vpack.c.b16 %v360, %v359
    %v373 = vpack.c.b16 %v362, %v361
    %v374 = vpack.c.b16 %v364, %v363
    %v375 = vpack.c.b16 %v366, %v365
    %v376 = vpack.c.b16 %v368, %v367
    %385 = vmatpush.bf16.msra.mxu0 %v376
    %386 = vmatpush.bf16.msra.mxu0 %v375
    %387 = vmatpush.bf16.msra.mxu0 %v374
    %388 = vmatpush.bf16.msra.mxu0 %v373
    %389 = vmatpush.bf16.msra.mxu0 %v372
    %390 = vmatpush.bf16.msra.mxu0 %v371
    %391 = vmatpush.bf16.msra.mxu0 %v370
    %392 = vmatpush.bf16.msra.mxu0 %v369
    %393 = vmatmul.bf16.gmra.mxu0 %v333
    %v394 = vpop.f32.mrf.mxu0
    %v395 = vadd.f32 %v335, %v394
    %v396 = vpop.f32.mrf.mxu0
    %397 = vdwg.mxu0
    %v398 = vmul.f32 %v395, 0.5
    %v399 = vmul.f32 %v395, 0.044715
    %v400 = vmul.f32 %v399, %v395
    %v401 = vmul.f32 %v400, %v395
    %v402 = vadd.f32 %v395, %v401
    %v403 = vmul.f32 %v402, 0.7978845
    %v404 = vtanh.pop %v403
    %v405 = vadd.f32 %v404, 1.0
    %v406 = vmul.f32 %v398, %v405
    %v407 = vadd.f32 %v315, %v406
    %v408 = vld [vmem:[#allocation10] sm:$0xf]
    %v409 = vld [vmem:[#allocation10 + $0x4] sm:$0xf]
    %v410 = vld [vmem:[#allocation10 + $0x8] sm:$0xf]
    %v411 = vld [vmem:[#allocation10 + $0xc] sm:$0xf]
    %v412 = vld [vmem:[#allocation10 + $0x10] sm:$0xf]
    %v413 = vld [vmem:[#allocation10 + $0x14] sm:$0xf]
    %v414 = vld [vmem:[#allocation10 + $0x18] sm:$0xf]
    %v415 = vld [vmem:[#allocation10 + $0x1c] sm:$0xf]
    %v416 = vld [vmem:[#allocation10 + $0x20] sm:$0xf]
    %v417 = vld [vmem:[#allocation10 + $0x24] sm:$0xf]
    %v418 = vld [vmem:[#allocation10 + $0x28] sm:$0xf]
    %v419 = vld [vmem:[#allocation10 + $0x2c] sm:$0xf]
    %v420 = vld [vmem:[#allocation10 + $0x30] sm:$0xf]
    %v421 = vld [vmem:[#allocation10 + $0x34] sm:$0xf]
    %v422 = vld [vmem:[#allocation10 + $0x38] sm:$0xf]
    %v423 = vld [vmem:[#allocation10 + $0x3c] sm:$0xf]
    %v424 = vld [vmem:[%s8] sm:$0x1]
    %v425 = vpack.c.bf16 %v407, %v407
    %v427 = vperm.slane %v424, 0
    %v445 = vunpack.c.l.b16 %v408
    %v446 = vunpack.c.l.b16 %v409
    %v447 = vunpack.c.l.b16 %v410
    %v448 = vunpack.c.l.b16 %v411
    %v449 = vunpack.c.l.b16 %v412
    %v450 = vunpack.c.l.b16 %v413
    %v451 = vunpack.c.l.b16 %v414
    %v452 = vunpack.c.l.b16 %v415
    %v453 = vunpack.c.l.b16 %v416
    %v454 = vunpack.c.l.b16 %v417
    %v455 = vunpack.c.l.b16 %v418
    %v456 = vunpack.c.l.b16 %v419
    %v457 = vunpack.c.l.b16 %v420
    %v458 = vunpack.c.l.b16 %v421
    %v459 = vunpack.c.l.b16 %v422
    %v460 = vunpack.c.l.b16 %v423
    %v461 = vpack.c.b16 %v446, %v445
    %v462 = vpack.c.b16 %v448, %v447
    %v463 = vpack.c.b16 %v450, %v449
    %v464 = vpack.c.b16 %v452, %v451
    %v465 = vpack.c.b16 %v454, %v453
    %v466 = vpack.c.b16 %v456, %v455
    %v467 = vpack.c.b16 %v458, %v457
    %v468 = vpack.c.b16 %v460, %v459
    %477 = vmatpush.bf16.msra.mxu0 %v468
    %478 = vmatpush.bf16.msra.mxu0 %v467
    %479 = vmatpush.bf16.msra.mxu0 %v466
    %480 = vmatpush.bf16.msra.mxu0 %v465
    %481 = vmatpush.bf16.msra.mxu0 %v464
    %482 = vmatpush.bf16.msra.mxu0 %v463
    %483 = vmatpush.bf16.msra.mxu0 %v462
    %484 = vmatpush.bf16.msra.mxu0 %v461
    %485 = vmatmul.bf16.gmra.mxu0 %v425
    %v486 = vpop.f32.mrf.mxu0
    %v487 = vadd.f32 %v427, %v486
    %v488 = vpop.f32.mrf.mxu0
    %489 = vdwg.mxu0
    %v490 = vmul.f32 %v487, 0.5
    %v491 = vmul.f32 %v487, 0.044715
    %v492 = vmul.f32 %v491, %v487
    %v493 = vmul.f32 %v492, %v487
    %v494 = vadd.f32 %v487, %v493
    %v495 = vmul.f32 %v494, 0.7978845
    %v496 = vtanh.pop %v495
    %v497 = vadd.f32 %v496, 1.0
    %v498 = vmul.f32 %v490, %v497
    %v499 = vadd.f32 %v407, %v498
    %v500 = vld [vmem:[#allocation11] sm:$0xf]
    %v501 = vld [vmem:[#allocation11 + $0x4] sm:$0xf]
    %v502 = vld [vmem:[#allocation11 + $0x8] sm:$0xf]
    %v503 = vld [vmem:[#allocation11 + $0xc] sm:$0xf]
    %v504 = vld [vmem:[#allocation11 + $0x10] sm:$0xf]
    %v505 = vld [vmem:[#allocation11 + $0x14] sm:$0xf]
    %v506 = vld [vmem:[#allocation11 + $0x18] sm:$0xf]
    %v507 = vld [vmem:[#allocation11 + $0x1c] sm:$0xf]
    %v508 = vld [vmem:[#allocation11 + $0x20] sm:$0xf]
    %v509 = vld [vmem:[#allocation11 + $0x24] sm:$0xf]
    %v510 = vld [vmem:[#allocation11 + $0x28] sm:$0xf]
    %v511 = vld [vmem:[#allocation11 + $0x2c] sm:$0xf]
    %v512 = vld [vmem:[#allocation11 + $0x30] sm:$0xf]
    %v513 = vld [vmem:[#allocation11 + $0x34] sm:$0xf]
    %v514 = vld [vmem:[#allocation11 + $0x38] sm:$0xf]
    %v515 = vld [vmem:[#allocation11 + $0x3c] sm:$0xf]
    %v516 = vld [vmem:[%s10] sm:$0x1]
    %v517 = vpack.c.bf16 %v499, %v499
    %v519 = vperm.slane %v516, 0
    %v537 = vunpack.c.l.b16 %v500
    %v538 = vunpack.c.l.b16 %v501
    %v539 = vunpack.c.l.b16 %v502
    %v540 = vunpack.c.l.b16 %v503
    %v541 = vunpack.c.l.b16 %v504
    %v542 = vunpack.c.l.b16 %v505
    %v543 = vunpack.c.l.b16 %v506
    %v544 = vunpack.c.l.b16 %v507
    %v545 = vunpack.c.l.b16 %v508
    %v546 = vunpack.c.l.b16 %v509
    %v547 = vunpack.c.l.b16 %v510
    %v548 = vunpack.c.l.b16 %v511
    %v549 = vunpack.c.l.b16 %v512
    %v550 = vunpack.c.l.b16 %v513
    %v551 = vunpack.c.l.b16 %v514
    %v552 = vunpack.c.l.b16 %v515
    %v553 = vpack.c.b16 %v538, %v537
    %v554 = vpack.c.b16 %v540, %v539
    %v555 = vpack.c.b16 %v542, %v541
    %v556 = vpack.c.b16 %v544, %v543
    %v557 = vpack.c.b16 %v546, %v545
    %v558 = vpack.c.b16 %v548, %v547
    %v559 = vpack.c.b16 %v550, %v549
    %v560 = vpack.c.b16 %v552, %v551
    %569 = vmatpush.bf16.msra.mxu0 %v560
    %570 = vmatpush.bf16.msra.mxu0 %v559
    %571 = vmatpush.bf16.msra.mxu0 %v558
    %572 = vmatpush.bf16.msra.mxu0 %v557
    %573 = vmatpush.bf16.msra.mxu0 %v556
    %574 = vmatpush.bf16.msra.mxu0 %v555
    %575 = vmatpush.bf16.msra.mxu0 %v554
    %576 = vmatpush.bf16.msra.mxu0 %v553
    %577 = vmatmul.bf16.gmra.mxu0 %v517
    %v578 = vpop.f32.mrf.mxu0
    %v579 = vadd.f32 %v519, %v578
    %v580 = vpop.f32.mrf.mxu0
    %581 = vdwg.mxu0
    %v582 = vmul.f32 %v579, 0.5
    %v583 = vmul.f32 %v579, 0.044715
    %v584 = vmul.f32 %v583, %v579
    %v585 = vmul.f32 %v584, %v579
    %v586 = vadd.f32 %v579, %v585
    %v587 = vmul.f32 %v586, 0.7978845
    %v588 = vtanh.pop %v587
    %v589 = vadd.f32 %v588, 1.0
    %v590 = vmul.f32 %v582, %v589
    %591 = vst [vmem:[#allocation13] sm:$0xff] %v590
    // Predicated region
    $region70: #{tpu_custom_call.1} parent=1 // pred_check
      _
    $region71: #{tpu_custom_call.1} parent=1 // pred_check_branch
      %593 = sbr.rel (0) target = $region73
    $region72: #{tpu_custom_call.1} parent=1 // pred_region
      %595 = vsyncadd [#allocation4], 0
      %s597 = sshll.u32 [#allocation13], 4
      %s598 = int_to_ptr.vmem [resolvable:$true] %s597
      %s599 = sshll.u32 %s11, 4
      %s600 = int_to_ptr.hbm [resolvable:$true] %s599
      %602 = dma.vmem_to_hbm [thread:$0]  %s598, 128, %s600, [#allocation4]
    $region73: #{tpu_custom_call.1} parent=1 // pred_fallthru
      _
    // Predicated region
    $region74: #{tpu_custom_call.1} parent=1 // pred_check
      _
    $region75: #{tpu_custom_call.1} parent=1 // pred_check_branch
      %604 = sbr.rel (0) target = $region77
    $region76: #{tpu_custom_call.1} parent=1 // pred_region
      %606 = dma.done [#allocation4], 128
    $region77: #{tpu_custom_call.1} parent=1 // pred_fallthru
      _
    %607 = vsyncpa [#allocation3], 1
    %608 = vsyncpa [#allocation6], 1
    %609 = vsyncpa [#allocation9], 1
    %610 = vsyncpa [#allocation12], 1
    %611 = vsyncpa [#allocation4], 1

</llo_original>
